<compile_context>
chip_gen: v5e
topology: v5e:2x2
jax: 0.10.0
libtpu: 0.0.40
codegen_flags: <defaults>
</compile_context>

<pallas_src>
import functools

import numpy as np
import jax
import jax.numpy as jnp
from jax import lax
from jax.experimental import pallas as pl
from jax.experimental.pallas import tpu as pltpu


# ---------------------------------------------------------------------------
# Kernel
# ---------------------------------------------------------------------------
def _cconvt_kernel(Cout, inv_w, inv_h,
                   x_ref, wct_ref, bc_ref, aw_ref, bw_ref, ah_ref, bh_ref,
                   out_ref):
    # x_ref   : (Bt, 2*Cin, HW) f32   Bt images, channels on sublanes, flat spatial on lanes
    # wct_ref : (2*Cout, 2*Cin) bf16  fused complex weight, already transposed
    # bc_ref  : (2*Cout, 1)     f32   fused bias (br - bi ; br + bi)
    # aw_ref  : (HW, H) bf16 0/1 sum-over-W      bw_ref : (H, HW) bf16 0/1 broadcast-over-W
    # ah_ref  : (HW, W) bf16 0/1 sum-over-H      bh_ref : (W, HW) bf16 0/1 broadcast-over-H
    # out_ref : (Bt, 2*Cout, HW)      [real ; imag] halves of each image
    wct = wct_ref[...]
    bc = bc_ref[...]
    aw = aw_ref[...]
    bw = bw_ref[...]
    ah = ah_ref[...]
    bh = bh_ref[...]
    Bt = x_ref.shape[0]

    def per_image(b, carry):
        # bf16 cast happens here (VPU), not in the wrapper: x streams from HBM as f32.
        x = x_ref[b].astype(jnp.bfloat16)                                  # (2*Cin, HW)

        # Fused complex 1x1 transposed conv: one bf16 MXU matmul, f32 accumulation.
        y = jnp.dot(wct, x, preferred_element_type=jnp.float32) + bc      # (2*Cout, HW)

        # Gates for BOTH halves in one pooling pass over the stacked [real; imag] slab.
        yb = y.astype(jnp.bfloat16)
        fg = jax.nn.sigmoid(
            inv_w * jnp.dot(yb, aw, preferred_element_type=jnp.float32))  # (2*Cout, H)
        tg = jax.nn.sigmoid(
            inv_h * jnp.dot(yb, ah, preferred_element_type=jnp.float32))  # (2*Cout, W)
        # Broadcast back over lanes with 0/1 selection matmuls.  Gate values are quantized
        # to bf16 here -- the only sub-f32 step after the conv (~1 bf16 ulp on the gate).
        fg_full = jnp.dot(fg.astype(jnp.bfloat16), bw,
                          preferred_element_type=jnp.float32)              # (2*Cout, HW)
        tg_full = jnp.dot(tg.astype(jnp.bfloat16), bh,
                          preferred_element_type=jnp.float32)              # (2*Cout, HW)
        g = fg_full * tg_full                                              # combined gate

        real = y[:Cout] * g[:Cout]          # gated real branch
        # Module semantics: `imag = real * scale_imag` -- the *gated real* branch is scaled
        # by the imag gates; the imag conv output only enters through its gates.
        imag = real * g[Cout:]

        # One full-tile lane-dense store per image.
        out_ref[b] = jnp.concatenate([real, imag], axis=0).astype(out_ref.dtype)
        return carry

    lax.fori_loop(0, Bt, per_image, 0, unroll=True)


# ---------------------------------------------------------------------------
# Helpers
# ---------------------------------------------------------------------------
def _round_up(n, m):
    return -(-n // m) * m


def _padded_vmem_bytes(shape, itemsize):
    """VMEM bytes of one buffer of `shape` after (sublane=8, lane=128) tile padding."""
    *lead, r, c = shape
    lead = int(np.prod(lead)) if lead else 1
    return lead * _round_up(r, 8) * _round_up(c, 128) * itemsize


@functools.lru_cache(maxsize=None)
def _gate_mats(H, W):
    """0/1 bf16 pool / broadcast masks for mean-pool gates on the flat (C, H*W) layout
    (column index = h*W + w).  Built once per (H, W) and cached (constant construction is
    hoisted out of the per-call path); 1/W and 1/H are applied as f32 scalars in-kernel."""
    s = np.arange(H * W)
    aw = (s[:, None] // W == np.arange(H)[None, :]).astype(np.float32)    # (HW, H)
    ah = (s[:, None] % W == np.arange(W)[None, :]).astype(np.float32)     # (HW, W)
    as_bf16 = lambda a: jnp.asarray(a, dtype=jnp.bfloat16)                # 0/1 exact in bf16
    return as_bf16(aw), as_bf16(aw.T), as_bf16(ah), as_bf16(ah.T)


def _pick_block_batch(B, per_image_bytes, target_bytes=4 << 20):
    """Largest divisor Bt of B whose per-step activation block stays under `target_bytes`,
    while keeping >= 2 grid steps whenever B >= 2 (v7x has two TensorCores sharing the
    'parallel' grid axis)."""
    best = 1
    for bt in range(1, B + 1):
        if B % bt:
            continue
        if bt * per_image_bytes > target_bytes:
            continue
        if B >= 2 and B // bt < 2:
            continue
        best = bt
    return best


# ---------------------------------------------------------------------------
# Wrapper
# ---------------------------------------------------------------------------
def c_conv_transpose2d(x, wr, wi, br, bi, *, out_dtype=jnp.float32):
    """x: (B, 2*Cin, H, W) NCHW.  wr/wi: (Cin, Cout) (1x1 kernels).  br/bi: (Cout,).
    Returns (B, 2*Cout, H, W) NCHW, matching the PyTorch module's forward.
    Pass out_dtype=jnp.bfloat16 to halve the output HBM stream if downstream tolerates it."""
    B, C2, H, W = x.shape
    Cin = C2 // 2
    Cout = wr.shape[1]
    HW = H * W

    # NCHW -> (B, 2*Cin, H*W): merges trailing dims only => free, no HBM transpose.
    # x keeps its dtype; the bf16 cast happens inside the kernel (saves a separate XLA pass).
    x_flat = x.reshape(B, C2, HW)

    # Fused complex weight (transposed so the spatial axis stays on lanes):
    #   real = wr^T xr - wi^T xi ,  imag = wi^T xr + wr^T xi
    wrq = wr.astype(jnp.bfloat16)
    wiq = wi.astype(jnp.bfloat16)
    wct = jnp.concatenate(
        [jnp.concatenate([wrq.T, -wiq.T], axis=1),
         jnp.concatenate([wiq.T,  wrq.T], axis=1)], axis=0)               # (2*Cout, 2*Cin)
    bc = jnp.concatenate([br - bi, br + bi]).astype(jnp.float32).reshape(2 * Cout, 1)

    aw, bw, ah, bh = _gate_mats(H, W)                                     # cached constants

    # --- block sizing --------------------------------------------------------
    out_itemsize = jnp.dtype(out_dtype).itemsize
    per_image_bytes = (_padded_vmem_bytes((1, C2, HW), x_flat.dtype.itemsize)
                       + _padded_vmem_bytes((1, 2 * Cout, HW), out_itemsize))
    Bt = _pick_block_batch(B, per_image_bytes)
    grid = (B // Bt,)

    # Raise the scoped-VMEM limit only when the per-step working set outgrows the default
    # (16 MiB v5e / 32 MiB v6e,v7x); cap with headroom below v7x's 64 MiB physical VMEM.
    const_bytes = (_padded_vmem_bytes((2 * Cout, 2 * Cin), 2)
                   + _padded_vmem_bytes((2 * Cout, 1), 4)
                   + _padded_vmem_bytes((HW, H), 2) + _padded_vmem_bytes((H, HW), 2)
                   + _padded_vmem_bytes((HW, W), 2) + _padded_vmem_bytes((W, HW), 2))
    live_bytes = 8 * _padded_vmem_bytes((2 * Cout, HW), 4)   # per-image f32 intermediates
    est = 2 * Bt * per_image_bytes + const_bytes + live_bytes
    vmem_limit = int(min(1.25 * est, 56 << 20)) if est > (24 << 20) else None

    kernel = functools.partial(_cconvt_kernel, Cout, float(1.0 / W), float(1.0 / H))

    def build_call(single_buffer_consts):
        def const_spec(shape):
            idx = lambda b, _n=len(shape): (0,) * _n
            if single_buffer_consts:
                # Grid-invariant block: one pipeline buffer is enough (saves VMEM; v7x).
                return pl.BlockSpec(shape, idx, pipeline_mode=pl.Buffered(1))
            return pl.BlockSpec(shape, idx)

        return pl.pallas_call(
            kernel,
            out_shape=jax.ShapeDtypeStruct((B, 2 * Cout, HW), out_dtype),
            grid_spec=pltpu.PrefetchScalarGridSpec(
                num_scalar_prefetch=0,
                grid=grid,
                in_specs=[
                    pl.BlockSpec((Bt, C2, HW), lambda b: (b, 0, 0)),
                    const_spec((2 * Cout, 2 * Cin)),
                    const_spec((2 * Cout, 1)),
                    const_spec((HW, H)),
                    const_spec((H, HW)),
                    const_spec((HW, W)),
                    const_spec((W, HW)),
                ],
                out_specs=pl.BlockSpec((Bt, 2 * Cout, HW), lambda b: (b, 0, 0)),
            ),
            compiler_params=pltpu.CompilerParams(
                dimension_semantics=("parallel",),
                vmem_limit_bytes=vmem_limit),
        )

    try:
        out_flat = build_call(True)(x_flat, wct, bc, aw, bw, ah, bh)
    except Exception:
        # Fallback if pipeline_mode=pl.Buffered(1) is unsupported on this jax/backend.
        out_flat = build_call(False)(x_flat, wct, bc, aw, bw, ah, bh)

    # (B, 2*Cout, H*W) -> NCHW: splits the trailing dim only => free.
    return out_flat.reshape(B, 2 * Cout, H, W)


# ---------------------------------------------------------------------------
# Reference
# ---------------------------------------------------------------------------
def _reference(x, wr, wi, br, bi, *, mirror_bf16=True):
    """Pure-JAX reference of the PyTorch forward (complex_axis=1, 1x1 kernel).
    With mirror_bf16=True the kernel's bf16 quantization of MXU operands (x, weights,
    pooled activations, gate values) is mirrored so the comparison can be tight; with
    mirror_bf16=False it is the pure-f32 module forward."""
    f32 = jnp.float32
    q = (lambda a: a.astype(jnp.bfloat16).astype(f32)) if mirror_bf16 else (
        lambda a: a.astype(f32))
    B, C2, H, W = x.shape
    Cin = C2 // 2
    xq, wrq, wiq = q(x), q(wr), q(wi)
    real_in, imag_in = xq[:, :Cin], xq[:, Cin:]

    def conv1x1(inp, w, b):  # NCHW, w: (Cin, Cout)
        return jnp.einsum('bchw,cd->bdhw', inp, w,
                          precision=lax.Precision.HIGHEST) + b[None, :, None, None]

    real = conv1x1(real_in, wrq, br) - conv1x1(imag_in, wiq, bi)
    imag = conv1x1(real_in, wiq, bi) + conv1x1(imag_in, wrq, br)

    def gate(t):  # FreqGate * TemporalGate (same definitions as the kernel)
        tq = q(t)
        fg = jax.nn.sigmoid(jnp.mean(tq, axis=3, keepdims=True))
        tg = jax.nn.sigmoid(jnp.mean(tq, axis=2, keepdims=True))
        return q(fg) * q(tg)

    real = real * gate(real)          # gate(real) uses the ungated real branch
    imag = real * gate(imag)          # module: `imag = real * scale_imag`
    return jnp.concatenate([real, imag], axis=1)


if __name__ == "__main__":
    B, in_channels, out_channels, H, W = 2, 8, 8, 16, 16
    Cin, Cout = in_channels // 2, out_channels // 2

    key = jax.random.PRNGKey(0)
    kx, kr, ki = jax.random.split(key, 3)
    x = jax.random.normal(kx, (B, in_channels, H, W), dtype=jnp.float32)

    # nn.ConvTranspose2d weight shape: (Cin, Cout, kH, kW) with kH=kW=1; std=0.05, bias=0.
    wr4 = 0.05 * jax.random.normal(kr, (Cin, Cout, 1, 1), dtype=jnp.float32)
    wi4 = 0.05 * jax.random.normal(ki, (Cin, Cout, 1, 1), dtype=jnp.float32)
    wr = wr4.reshape(Cin, Cout)
    wi = wi4.reshape(Cin, Cout)
    br = jnp.zeros((Cout,), jnp.float32)
    bi = jnp.zeros((Cout,), jnp.float32)

    out = c_conv_transpose2d(x, wr, wi, br, bi)
    out = jax.block_until_ready(out)
    assert out.shape == (B, out_channels, H, W)

    # Tight check vs a reference mirroring the kernel's bf16 MXU-operand quantization
    # (tolerance covers one bf16 ulp (~0.4%) on a gate value at rounding boundaries).
    ref_q = _reference(x, wr, wi, br, bi, mirror_bf16=True)
    np.testing.assert_allclose(np.asarray(out), np.asarray(ref_q), rtol=5e-3, atol=5e-5)

    # Sanity check vs the pure-f32 module forward (bf16 quantization is the only delta).
    ref_f32 = _reference(x, wr, wi, br, bi, mirror_bf16=False)
    np.testing.assert_allclose(np.asarray(out), np.asarray(ref_f32), rtol=5e-2, atol=3e-3)

    print("KERNEL_OK")
</pallas_src>

<mosaic_0001>
module attributes {stable_mosaic.version = 11 : i64} {
  func.func @_cconvt_kernel(%arg0: i32, %arg1: memref<1x8x256xf32, #tpu.memory_space<vmem>>, %arg2: memref<8x8xbf16, #tpu.memory_space<vmem>>, %arg3: memref<8x1xf32, #tpu.memory_space<vmem>>, %arg4: memref<256x16xbf16, #tpu.memory_space<vmem>>, %arg5: memref<16x256xbf16, #tpu.memory_space<vmem>>, %arg6: memref<256x16xbf16, #tpu.memory_space<vmem>>, %arg7: memref<16x256xbf16, #tpu.memory_space<vmem>>, %arg8: memref<1x8x256xf32, #tpu.memory_space<vmem>>) attributes {dimension_semantics = [#tpu.dimension_semantics<parallel>], iteration_bounds = array<i64: 2>, scalar_prefetch = 0 : i64, scratch_operands = 0 : i64, tpu.core_type = #tpu.core_type<tc>, window_params = [{transform_indices = @transform_0, window_bounds = array<i64: 1, 8, 256>}, {pipeline_mode = #tpu.pipeline_mode<synchronous>, transform_indices = @transform_1, window_bounds = array<i64: 8, 8>}, {pipeline_mode = #tpu.pipeline_mode<synchronous>, transform_indices = @transform_2, window_bounds = array<i64: 8, 1>}, {pipeline_mode = #tpu.pipeline_mode<synchronous>, transform_indices = @transform_3, window_bounds = array<i64: 256, 16>}, {pipeline_mode = #tpu.pipeline_mode<synchronous>, transform_indices = @transform_4, window_bounds = array<i64: 16, 256>}, {pipeline_mode = #tpu.pipeline_mode<synchronous>, transform_indices = @transform_5, window_bounds = array<i64: 256, 16>}, {pipeline_mode = #tpu.pipeline_mode<synchronous>, transform_indices = @transform_6, window_bounds = array<i64: 16, 256>}, {transform_indices = @transform_7, window_bounds = array<i64: 1, 8, 256>}]} {
    %c0 = arith.constant 0 : index
    %c0_0 = arith.constant 0 : index
    %0 = vector.load %arg2[%c0, %c0_0] : memref<8x8xbf16, #tpu.memory_space<vmem>>, vector<8x8xbf16>
    %c0_1 = arith.constant 0 : index
    %c0_2 = arith.constant 0 : index
    %1 = vector.load %arg3[%c0_1, %c0_2] : memref<8x1xf32, #tpu.memory_space<vmem>>, vector<8x1xf32>
    %c0_3 = arith.constant 0 : index
    %c0_4 = arith.constant 0 : index
    %2 = vector.load %arg4[%c0_3, %c0_4] : memref<256x16xbf16, #tpu.memory_space<vmem>>, vector<256x16xbf16>
    %c0_5 = arith.constant 0 : index
    %c0_6 = arith.constant 0 : index
    %3 = vector.load %arg5[%c0_5, %c0_6] : memref<16x256xbf16, #tpu.memory_space<vmem>>, vector<16x256xbf16>
    %c0_7 = arith.constant 0 : index
    %c0_8 = arith.constant 0 : index
    %4 = vector.load %arg6[%c0_7, %c0_8] : memref<256x16xbf16, #tpu.memory_space<vmem>>, vector<256x16xbf16>
    %c0_9 = arith.constant 0 : index
    %c0_10 = arith.constant 0 : index
    %5 = vector.load %arg7[%c0_9, %c0_10] : memref<16x256xbf16, #tpu.memory_space<vmem>>, vector<16x256xbf16>
    %c0_i32 = arith.constant 0 : i32
    %6 = arith.index_cast %c0_i32 : i32 to index
    %c0_11 = arith.constant 0 : index
    %c0_12 = arith.constant 0 : index
    %7 = vector.load %arg1[%6, %c0_11, %c0_12] : memref<1x8x256xf32, #tpu.memory_space<vmem>>, vector<1x8x256xf32>
    %8 = vector.shape_cast %7 : vector<1x8x256xf32> to vector<8x256xf32>
    %9 = arith.truncf %8 : vector<8x256xf32> to vector<8x256xbf16>
    %cst = arith.constant dense<0.000000e+00> : vector<8x256xf32>
    %10 = tpu.matmul %0, %9, %cst {dimension_numbers = #tpu.dot_dimension_numbers<[1], [0], [0], [1], [0, 0, 1, 1], [], []>} : vector<8x8xbf16>, vector<8x256xbf16>, vector<8x256xf32> -> vector<8x256xf32>
    %11 = vector.broadcast %1 : vector<8x1xf32> to vector<8x256xf32>
    %12 = arith.addf %10, %11 : vector<8x256xf32>
    %13 = arith.truncf %12 : vector<8x256xf32> to vector<8x256xbf16>
    %cst_13 = arith.constant dense<0.000000e+00> : vector<8x16xf32>
    %14 = tpu.matmul %13, %2, %cst_13 {dimension_numbers = #tpu.dot_dimension_numbers<[1], [0], [0], [1], [0, 0, 1, 1], [], []>} : vector<8x256xbf16>, vector<256x16xbf16>, vector<8x16xf32> -> vector<8x16xf32>
    %cst_14 = arith.constant 6.250000e-02 : f32
    %15 = vector.broadcast %cst_14 : f32 to vector<8x16xf32>
    %16 = arith.mulf %15, %14 : vector<8x16xf32>
    %17 = arith.negf %16 : vector<8x16xf32>
    %18 = math.exp %17 : vector<8x16xf32>
    %cst_15 = arith.constant 1.000000e+00 : f32
    %19 = vector.broadcast %cst_15 : f32 to vector<8x16xf32>
    %20 = arith.addf %19, %18 : vector<8x16xf32>
    %21 = arith.divf %19, %20 : vector<8x16xf32>
    %cst_16 = arith.constant dense<0.000000e+00> : vector<8x16xf32>
    %22 = tpu.matmul %13, %4, %cst_16 {dimension_numbers = #tpu.dot_dimension_numbers<[1], [0], [0], [1], [0, 0, 1, 1], [], []>} : vector<8x256xbf16>, vector<256x16xbf16>, vector<8x16xf32> -> vector<8x16xf32>
    %cst_17 = arith.constant 6.250000e-02 : f32
    %23 = vector.broadcast %cst_17 : f32 to vector<8x16xf32>
    %24 = arith.mulf %23, %22 : vector<8x16xf32>
    %25 = arith.negf %24 : vector<8x16xf32>
    %26 = math.exp %25 : vector<8x16xf32>
    %cst_18 = arith.constant 1.000000e+00 : f32
    %27 = vector.broadcast %cst_18 : f32 to vector<8x16xf32>
    %28 = arith.addf %27, %26 : vector<8x16xf32>
    %29 = arith.divf %27, %28 : vector<8x16xf32>
    %30 = arith.truncf %21 : vector<8x16xf32> to vector<8x16xbf16>
    %cst_19 = arith.constant dense<0.000000e+00> : vector<8x256xf32>
    %31 = tpu.matmul %30, %3, %cst_19 {dimension_numbers = #tpu.dot_dimension_numbers<[1], [0], [0], [1], [0, 0, 1, 1], [], []>} : vector<8x16xbf16>, vector<16x256xbf16>, vector<8x256xf32> -> vector<8x256xf32>
    %32 = arith.truncf %29 : vector<8x16xf32> to vector<8x16xbf16>
    %cst_20 = arith.constant dense<0.000000e+00> : vector<8x256xf32>
    %33 = tpu.matmul %32, %5, %cst_20 {dimension_numbers = #tpu.dot_dimension_numbers<[1], [0], [0], [1], [0, 0, 1, 1], [], []>} : vector<8x16xbf16>, vector<16x256xbf16>, vector<8x256xf32> -> vector<8x256xf32>
    %34 = arith.mulf %31, %33 : vector<8x256xf32>
    %35 = vector.extract_strided_slice %12 {offsets = [0, 0], sizes = [4, 256], strides = [1, 1]} : vector<8x256xf32> to vector<4x256xf32>
    %36 = vector.extract_strided_slice %34 {offsets = [0, 0], sizes = [4, 256], strides = [1, 1]} : vector<8x256xf32> to vector<4x256xf32>
    %37 = arith.mulf %35, %36 : vector<4x256xf32>
    %38 = vector.extract_strided_slice %34 {offsets = [4, 0], sizes = [4, 256], strides = [1, 1]} : vector<8x256xf32> to vector<4x256xf32>
    %39 = arith.mulf %37, %38 : vector<4x256xf32>
    %40 = tpu.concatenate %37, %39 in 0 : vector<4x256xf32>, vector<4x256xf32> -> vector<8x256xf32>
    %41 = arith.index_cast %c0_i32 : i32 to index
    %c0_21 = arith.constant 0 : index
    %c0_22 = arith.constant 0 : index
    %42 = vector.load %arg8[%41, %c0_21, %c0_22] : memref<1x8x256xf32, #tpu.memory_space<vmem>>, vector<1x8x256xf32>
    %43 = vector.shape_cast %42 : vector<1x8x256xf32> to vector<8x256xf32>
    %44 = vector.shape_cast %40 : vector<8x256xf32> to vector<1x8x256xf32>
    tpu.vector_store %arg8[%41, %c0_21, %c0_22], %44 {strides = array<i32>} : memref<1x8x256xf32, #tpu.memory_space<vmem>>, vector<1x8x256xf32>,
    %c1_i32 = arith.constant 1 : i32
    return
  }
  func.func @transform_0(%arg0: i32) -> (i32, i32, i32) {
    %c0_i32 = arith.constant 0 : i32
    %c0_i32_0 = arith.constant 0 : i32
    %c0_i32_1 = arith.constant 0 : i32
    return %arg0, %c0_i32, %c0_i32_0 : i32, i32, i32
  }
  func.func @transform_1(%arg0: i32) -> (i32, i32) {
    %c0_i32 = arith.constant 0 : i32
    %c0_i32_0 = arith.constant 0 : i32
    %c0_i32_1 = arith.constant 0 : i32
    return %c0_i32, %c0_i32_0 : i32, i32
  }
  func.func @transform_2(%arg0: i32) -> (i32, i32) {
    %c0_i32 = arith.constant 0 : i32
    %c0_i32_0 = arith.constant 0 : i32
    %c0_i32_1 = arith.constant 0 : i32
    return %c0_i32, %c0_i32_0 : i32, i32
  }
  func.func @transform_3(%arg0: i32) -> (i32, i32) {
    %c0_i32 = arith.constant 0 : i32
    %c0_i32_0 = arith.constant 0 : i32
    %c0_i32_1 = arith.constant 0 : i32
    return %c0_i32, %c0_i32_0 : i32, i32
  }
  func.func @transform_4(%arg0: i32) -> (i32, i32) {
    %c0_i32 = arith.constant 0 : i32
    %c0_i32_0 = arith.constant 0 : i32
    %c0_i32_1 = arith.constant 0 : i32
    return %c0_i32, %c0_i32_0 : i32, i32
  }
  func.func @transform_5(%arg0: i32) -> (i32, i32) {
    %c0_i32 = arith.constant 0 : i32
    %c0_i32_0 = arith.constant 0 : i32
    %c0_i32_1 = arith.constant 0 : i32
    return %c0_i32, %c0_i32_0 : i32, i32
  }
  func.func @transform_6(%arg0: i32) -> (i32, i32) {
    %c0_i32 = arith.constant 0 : i32
    %c0_i32_0 = arith.constant 0 : i32
    %c0_i32_1 = arith.constant 0 : i32
    return %c0_i32, %c0_i32_0 : i32, i32
  }
  func.func @transform_7(%arg0: i32) -> (i32, i32, i32) {
    %c0_i32 = arith.constant 0 : i32
    %c0_i32_0 = arith.constant 0 : i32
    %c0_i32_1 = arith.constant 0 : i32
    return %arg0, %c0_i32, %c0_i32_0 : i32, i32, i32
  }
}

module attributes {stable_mosaic.version = 11 : i64} {
  func.func @_cconvt_kernel(%arg0: i32, %arg1: memref<1x8x256xf32, #tpu.memory_space<vmem>>, %arg2: memref<8x8xbf16, #tpu.memory_space<vmem>>, %arg3: memref<8x1xf32, #tpu.memory_space<vmem>>, %arg4: memref<256x16xbf16, #tpu.memory_space<vmem>>, %arg5: memref<16x256xbf16, #tpu.memory_space<vmem>>, %arg6: memref<256x16xbf16, #tpu.memory_space<vmem>>, %arg7: memref<16x256xbf16, #tpu.memory_space<vmem>>, %arg8: memref<1x8x256xf32, #tpu.memory_space<vmem>>) attributes {dimension_semantics = [#tpu.dimension_semantics<parallel>], iteration_bounds = array<i64: 2>, scalar_prefetch = 0 : i64, scratch_operands = 0 : i64, tpu.core_type = #tpu.core_type<tc>, window_params = [{transform_indices = @transform_0, window_bounds = array<i64: 1, 8, 256>}, {pipeline_mode = #tpu.pipeline_mode<synchronous>, transform_indices = @transform_1, window_bounds = array<i64: 8, 8>}, {pipeline_mode = #tpu.pipeline_mode<synchronous>, transform_indices = @transform_2, window_bounds = array<i64: 8, 1>}, {pipeline_mode = #tpu.pipeline_mode<synchronous>, transform_indices = @transform_3, window_bounds = array<i64: 256, 16>}, {pipeline_mode = #tpu.pipeline_mode<synchronous>, transform_indices = @transform_4, window_bounds = array<i64: 16, 256>}, {pipeline_mode = #tpu.pipeline_mode<synchronous>, transform_indices = @transform_5, window_bounds = array<i64: 256, 16>}, {pipeline_mode = #tpu.pipeline_mode<synchronous>, transform_indices = @transform_6, window_bounds = array<i64: 16, 256>}, {transform_indices = @transform_7, window_bounds = array<i64: 1, 8, 256>}]} {
    %c0 = arith.constant 0 : index
    %c0_0 = arith.constant 0 : index
    %0 = vector.load %arg2[%c0, %c0_0] : memref<8x8xbf16, #tpu.memory_space<vmem>>, vector<8x8xbf16>
    %c0_1 = arith.constant 0 : index
    %c0_2 = arith.constant 0 : index
    %1 = vector.load %arg3[%c0_1, %c0_2] : memref<8x1xf32, #tpu.memory_space<vmem>>, vector<8x1xf32>
    %c0_3 = arith.constant 0 : index
    %c0_4 = arith.constant 0 : index
    %2 = vector.load %arg4[%c0_3, %c0_4] : memref<256x16xbf16, #tpu.memory_space<vmem>>, vector<256x16xbf16>
    %c0_5 = arith.constant 0 : index
    %c0_6 = arith.constant 0 : index
    %3 = vector.load %arg5[%c0_5, %c0_6] : memref<16x256xbf16, #tpu.memory_space<vmem>>, vector<16x256xbf16>
    %c0_7 = arith.constant 0 : index
    %c0_8 = arith.constant 0 : index
    %4 = vector.load %arg6[%c0_7, %c0_8] : memref<256x16xbf16, #tpu.memory_space<vmem>>, vector<256x16xbf16>
    %c0_9 = arith.constant 0 : index
    %c0_10 = arith.constant 0 : index
    %5 = vector.load %arg7[%c0_9, %c0_10] : memref<16x256xbf16, #tpu.memory_space<vmem>>, vector<16x256xbf16>
    %c0_i32 = arith.constant 0 : i32
    %6 = arith.index_cast %c0_i32 : i32 to index
    %c0_11 = arith.constant 0 : index
    %c0_12 = arith.constant 0 : index
    %7 = vector.load %arg1[%6, %c0_11, %c0_12] : memref<1x8x256xf32, #tpu.memory_space<vmem>>, vector<1x8x256xf32>
    %8 = vector.shape_cast %7 : vector<1x8x256xf32> to vector<8x256xf32>
    %9 = arith.truncf %8 : vector<8x256xf32> to vector<8x256xbf16>
    %cst = arith.constant dense<0.000000e+00> : vector<8x256xf32>
    %10 = tpu.matmul %0, %9, %cst {dimension_numbers = #tpu.dot_dimension_numbers<[1], [0], [0], [1], [0, 0, 1, 1], [], []>} : vector<8x8xbf16>, vector<8x256xbf16>, vector<8x256xf32> -> vector<8x256xf32>
    %11 = vector.broadcast %1 : vector<8x1xf32> to vector<8x256xf32>
    %12 = arith.addf %10, %11 : vector<8x256xf32>
    %13 = arith.truncf %12 : vector<8x256xf32> to vector<8x256xbf16>
    %cst_13 = arith.constant dense<0.000000e+00> : vector<8x16xf32>
    %14 = tpu.matmul %13, %2, %cst_13 {dimension_numbers = #tpu.dot_dimension_numbers<[1], [0], [0], [1], [0, 0, 1, 1], [], []>} : vector<8x256xbf16>, vector<256x16xbf16>, vector<8x16xf32> -> vector<8x16xf32>
    %cst_14 = arith.constant 6.250000e-02 : f32
    %15 = vector.broadcast %cst_14 : f32 to vector<8x16xf32>
    %16 = arith.mulf %15, %14 : vector<8x16xf32>
    %17 = arith.negf %16 : vector<8x16xf32>
    %18 = math.exp %17 : vector<8x16xf32>
    %cst_15 = arith.constant 1.000000e+00 : f32
    %19 = vector.broadcast %cst_15 : f32 to vector<8x16xf32>
    %20 = arith.addf %19, %18 : vector<8x16xf32>
    %21 = arith.divf %19, %20 : vector<8x16xf32>
    %cst_16 = arith.constant dense<0.000000e+00> : vector<8x16xf32>
    %22 = tpu.matmul %13, %4, %cst_16 {dimension_numbers = #tpu.dot_dimension_numbers<[1], [0], [0], [1], [0, 0, 1, 1], [], []>} : vector<8x256xbf16>, vector<256x16xbf16>, vector<8x16xf32> -> vector<8x16xf32>
    %cst_17 = arith.constant 6.250000e-02 : f32
    %23 = vector.broadcast %cst_17 : f32 to vector<8x16xf32>
    %24 = arith.mulf %23, %22 : vector<8x16xf32>
    %25 = arith.negf %24 : vector<8x16xf32>
    %26 = math.exp %25 : vector<8x16xf32>
    %cst_18 = arith.constant 1.000000e+00 : f32
    %27 = vector.broadcast %cst_18 : f32 to vector<8x16xf32>
    %28 = arith.addf %27, %26 : vector<8x16xf32>
    %29 = arith.divf %27, %28 : vector<8x16xf32>
    %30 = arith.truncf %21 : vector<8x16xf32> to vector<8x16xbf16>
    %cst_19 = arith.constant dense<0.000000e+00> : vector<8x256xf32>
    %31 = tpu.matmul %30, %3, %cst_19 {dimension_numbers = #tpu.dot_dimension_numbers<[1], [0], [0], [1], [0, 0, 1, 1], [], []>} : vector<8x16xbf16>, vector<16x256xbf16>, vector<8x256xf32> -> vector<8x256xf32>
    %32 = arith.truncf %29 : vector<8x16xf32> to vector<8x16xbf16>
    %cst_20 = arith.constant dense<0.000000e+00> : vector<8x256xf32>
    %33 = tpu.matmul %32, %5, %cst_20 {dimension_numbers = #tpu.dot_dimension_numbers<[1], [0], [0], [1], [0, 0, 1, 1], [], []>} : vector<8x16xbf16>, vector<16x256xbf16>, vector<8x256xf32> -> vector<8x256xf32>
    %34 = arith.mulf %31, %33 : vector<8x256xf32>
    %35 = vector.extract_strided_slice %12 {offsets = [0, 0], sizes = [4, 256], strides = [1, 1]} : vector<8x256xf32> to vector<4x256xf32>
    %36 = vector.extract_strided_slice %34 {offsets = [0, 0], sizes = [4, 256], strides = [1, 1]} : vector<8x256xf32> to vector<4x256xf32>
    %37 = arith.mulf %35, %36 : vector<4x256xf32>
    %38 = vector.extract_strided_slice %34 {offsets = [4, 0], sizes = [4, 256], strides = [1, 1]} : vector<8x256xf32> to vector<4x256xf32>
    %39 = arith.mulf %37, %38 : vector<4x256xf32>
    %40 = tpu.concatenate %37, %39 in 0 : vector<4x256xf32>, vector<4x256xf32> -> vector<8x256xf32>
    %41 = arith.index_cast %c0_i32 : i32 to index
    %c0_21 = arith.constant 0 : index
    %c0_22 = arith.constant 0 : index
    %42 = vector.load %arg8[%41, %c0_21, %c0_22] : memref<1x8x256xf32, #tpu.memory_space<vmem>>, vector<1x8x256xf32>
    %43 = vector.shape_cast %42 : vector<1x8x256xf32> to vector<8x256xf32>
    %44 = vector.shape_cast %40 : vector<8x256xf32> to vector<1x8x256xf32>
    tpu.vector_store %arg8[%41, %c0_21, %c0_22], %44 {strides = array<i32>} : memref<1x8x256xf32, #tpu.memory_space<vmem>>, vector<1x8x256xf32>,
    %c1_i32 = arith.constant 1 : i32
    return
  }
  func.func @transform_0(%arg0: i32) -> (i32, i32, i32) {
    %c0_i32 = arith.constant 0 : i32
    %c0_i32_0 = arith.constant 0 : i32
    %c0_i32_1 = arith.constant 0 : i32
    return %arg0, %c0_i32, %c0_i32_0 : i32, i32, i32
  }
  func.func @transform_1(%arg0: i32) -> (i32, i32) {
    %c0_i32 = arith.constant 0 : i32
    %c0_i32_0 = arith.constant 0 : i32
    %c0_i32_1 = arith.constant 0 : i32
    return %c0_i32, %c0_i32_0 : i32, i32
  }
  func.func @transform_2(%arg0: i32) -> (i32, i32) {
    %c0_i32 = arith.constant 0 : i32
    %c0_i32_0 = arith.constant 0 : i32
    %c0_i32_1 = arith.constant 0 : i32
    return %c0_i32, %c0_i32_0 : i32, i32
  }
  func.func @transform_3(%arg0: i32) -> (i32, i32) {
    %c0_i32 = arith.constant 0 : i32
    %c0_i32_0 = arith.constant 0 : i32
    %c0_i32_1 = arith.constant 0 : i32
    return %c0_i32, %c0_i32_0 : i32, i32
  }
  func.func @transform_4(%arg0: i32) -> (i32, i32) {
    %c0_i32 = arith.constant 0 : i32
    %c0_i32_0 = arith.constant 0 : i32
    %c0_i32_1 = arith.constant 0 : i32
    return %c0_i32, %c0_i32_0 : i32, i32
  }
  func.func @transform_5(%arg0: i32) -> (i32, i32) {
    %c0_i32 = arith.constant 0 : i32
    %c0_i32_0 = arith.constant 0 : i32
    %c0_i32_1 = arith.constant 0 : i32
    return %c0_i32, %c0_i32_0 : i32, i32
  }
  func.func @transform_6(%arg0: i32) -> (i32, i32) {
    %c0_i32 = arith.constant 0 : i32
    %c0_i32_0 = arith.constant 0 : i32
    %c0_i32_1 = arith.constant 0 : i32
    return %c0_i32, %c0_i32_0 : i32, i32
  }
  func.func @transform_7(%arg0: i32) -> (i32, i32, i32) {
    %c0_i32 = arith.constant 0 : i32
    %c0_i32_0 = arith.constant 0 : i32
    %c0_i32_1 = arith.constant 0 : i32
    return %arg0, %c0_i32, %c0_i32_0 : i32, i32, i32
  }
}

</mosaic_0001>

<llo_original>
// kernel: tpu_custom_call.1
$region0: #{tpu_custom_call.1}
  #allocation0 [shape = 'u32[]', space=smem, size = 0x4, offset = 0x4, fixed_abs, tag = 'smem constant byte address 0x4 - core index']
  #allocation1 [shape = 'u32[72,128]{1,0:T(1,128)}', space=vmem, size = 0x9000, scoped, tag = 'internal scratch']
  %s0 = inlined_call_operand.vmem [shape: f32[2,8,256], index: 0, kind: input, shape index: {}]
  %s1 = inlined_call_operand.vmem [shape: bf16[8,8], index: 1, kind: input, shape index: {}]
  %s2 = inlined_call_operand.vmem [shape: f32[8,1], index: 2, kind: input, shape index: {}]
  %s3 = inlined_call_operand.vmem [shape: bf16[256,16], index: 3, kind: input, shape index: {}]
  %s4 = inlined_call_operand.vmem [shape: bf16[16,256], index: 4, kind: input, shape index: {}]
  %s5 = inlined_call_operand.vmem [shape: bf16[256,16], index: 5, kind: input, shape index: {}]
  %s6 = inlined_call_operand.vmem [shape: bf16[16,256], index: 6, kind: input, shape index: {}]
  %s7 = inlined_call_operand.hbm [shape: f32[2,8,256], index: 7, kind: output, shape index: {}]
  %s8 = sld [smem:[#allocation0]]
  $region61: #{tpu_custom_call.1} parent=0
    _
  %s10 = ssub.s32 1, %s8
  %s11 = scalar_select 0, %s10, %s8
  $region1: #{tpu_custom_call.1} parent=0
    #allocation2 [shape = 'u8[16384]{0}', space=vmem, size = 0x4000, scoped, tag = 'output window, operand 0']
    #allocation3 [shape = 's32[2]{0}', space=sflag, size = 0x8, scoped, tag = 'scoped memory for tpu_custom_call.1']
    %12 = vsyncpa [#allocation3], 0
    %s13 = scalar_lea.sflag [#allocation3], 1
    %14 = vsyncpa %s13, 0
    loop: start=0, step=1, limit=4
    $region2: #{tpu_custom_call.1} parent=1 // loop_pre_header
      _
    $region3: #{tpu_custom_call.1} parent=1 // loop_header
      %s16 = sphi 0, %s20
      %p17 = scmp.ge.s32.totalorder %s16, 4
      %s26 = sphi 0, %s28
      %s29 = sphi 0, %s26
      %s30 = sphi 0, %s29
      %s46 = sphi 0, %s30
      %s50 = sphi 0, %s50
      %s52 = sphi 0, %s50
      %s53 = sphi 0, %s52
      %s67 = sphi 0, %s53
      %s71 = sphi 0, %s71
      %s73 = sphi 0, %s71
      %s74 = sphi 0, %s73
      %s88 = sphi 0, %s74
      %s92 = sphi 0, %s92
      %s94 = sphi 0, %s92
      %s95 = sphi 0, %s94
      %s109 = sphi 0, %s95
      %s113 = sphi 0, %s113
      %s115 = sphi 0, %s113
      %s116 = sphi 0, %s115
      %s130 = sphi 0, %s116
      %s134 = sphi 0, %s134
      %s136 = sphi 0, %s134
      %s137 = sphi 0, %s136
      %s151 = sphi 0, %s137
      %s155 = sphi 0, %s155
      %s157 = sphi 0, %s155
      %s158 = sphi 0, %s157
      %s172 = sphi 0, %s158
      %s178 = sphi 0, %s180
      %s181 = sphi 0, %s178
      %s182 = sphi 0, %s181
      %s198 = sphi 0, %s182
    $region4: #{tpu_custom_call.1} parent=1 // loop_header_branch
      %19 = sbr.rel (%p17) target = $region8
    $region5: #{tpu_custom_call.1} parent=1 // loop_body
      %s21 = ssub.s32 %s16, 1
      %s22 = ssub.s32 %s16, 2
      %s23 = sadd.s32 %s16, 1
      %s24 = ssub.s32 %s16, %s23
      %p25 = scmp.eq.s32.totalorder %s24, 0
      %s27 = sadd.s32 %s26, 1
      %s28 = scalar_select %p25, %s26, %s27
      %p31 = pneg %p25
      %p32 = scmp.eq.s32.totalorder %s16, 1
      %p33 = por %p31, %p32
      %p34 = scmp.ne.s32.totalorder %s26, %s29
      %p35 = scmp.eq.s32.totalorder %s16, 0
      %p36 = por %p34, %p35
      %p37 = scmp.ne.s32.totalorder %s26, %s29
      %p38 = scmp.eq.s32.totalorder %s21, 1
      %p39 = por %p37, %p38
      %p40 = scmp.ne.s32.totalorder %s29, %s30
      %p41 = scmp.eq.s32.totalorder %s21, 0
      %p42 = por %p40, %p41
      %p43 = scmp.ne.s32.totalorder %s29, %s30
      %p44 = scmp.eq.s32.totalorder %s22, 1
      %p45 = por %p43, %p44
      %p47 = scmp.ne.s32.totalorder %s30, %s46
      %p48 = scmp.eq.s32.totalorder %s22, 0
      %p49 = por %p47, %p48
      %s51 = sadd.s32 %s50, 1
      %p54 = scmp.eq.s32.totalorder %s16, 1
      %p55 = scmp.ne.s32.totalorder %s50, %s52
      %p56 = scmp.eq.s32.totalorder %s16, 0
      %p57 = por %p55, %p56
      %p58 = scmp.ne.s32.totalorder %s50, %s52
      %p59 = scmp.eq.s32.totalorder %s21, 1
      %p60 = por %p58, %p59
      %p61 = scmp.ne.s32.totalorder %s52, %s53
      %p62 = scmp.eq.s32.totalorder %s21, 0
      %p63 = por %p61, %p62
      %p64 = scmp.ne.s32.totalorder %s52, %s53
      %p65 = scmp.eq.s32.totalorder %s22, 1
      %p66 = por %p64, %p65
      %p68 = scmp.ne.s32.totalorder %s53, %s67
      %p69 = scmp.eq.s32.totalorder %s22, 0
      %p70 = por %p68, %p69
      %s72 = sadd.s32 %s71, 1
      %p75 = scmp.eq.s32.totalorder %s16, 1
      %p76 = scmp.ne.s32.totalorder %s71, %s73
      %p77 = scmp.eq.s32.totalorder %s16, 0
      %p78 = por %p76, %p77
      %p79 = scmp.ne.s32.totalorder %s71, %s73
      %p80 = scmp.eq.s32.totalorder %s21, 1
      %p81 = por %p79, %p80
      %p82 = scmp.ne.s32.totalorder %s73, %s74
      %p83 = scmp.eq.s32.totalorder %s21, 0
      %p84 = por %p82, %p83
      %p85 = scmp.ne.s32.totalorder %s73, %s74
      %p86 = scmp.eq.s32.totalorder %s22, 1
      %p87 = por %p85, %p86
      %p89 = scmp.ne.s32.totalorder %s74, %s88
      %p90 = scmp.eq.s32.totalorder %s22, 0
      %p91 = por %p89, %p90
      %s93 = sadd.s32 %s92, 1
      %p96 = scmp.eq.s32.totalorder %s16, 1
      %p97 = scmp.ne.s32.totalorder %s92, %s94
      %p98 = scmp.eq.s32.totalorder %s16, 0
      %p99 = por %p97, %p98
      %p100 = scmp.ne.s32.totalorder %s92, %s94
      %p101 = scmp.eq.s32.totalorder %s21, 1
      %p102 = por %p100, %p101
      %p103 = scmp.ne.s32.totalorder %s94, %s95
      %p104 = scmp.eq.s32.totalorder %s21, 0
      %p105 = por %p103, %p104
      %p106 = scmp.ne.s32.totalorder %s94, %s95
      %p107 = scmp.eq.s32.totalorder %s22, 1
      %p108 = por %p106, %p107
      %p110 = scmp.ne.s32.totalorder %s95, %s109
      %p111 = scmp.eq.s32.totalorder %s22, 0
      %p112 = por %p110, %p111
      %s114 = sadd.s32 %s113, 1
      %p117 = scmp.eq.s32.totalorder %s16, 1
      %p118 = scmp.ne.s32.totalorder %s113, %s115
      %p119 = scmp.eq.s32.totalorder %s16, 0
      %p120 = por %p118, %p119
      %p121 = scmp.ne.s32.totalorder %s113, %s115
      %p122 = scmp.eq.s32.totalorder %s21, 1
      %p123 = por %p121, %p122
      %p124 = scmp.ne.s32.totalorder %s115, %s116
      %p125 = scmp.eq.s32.totalorder %s21, 0
      %p126 = por %p124, %p125
      %p127 = scmp.ne.s32.totalorder %s115, %s116
      %p128 = scmp.eq.s32.totalorder %s22, 1
      %p129 = por %p127, %p128
      %p131 = scmp.ne.s32.totalorder %s116, %s130
      %p132 = scmp.eq.s32.totalorder %s22, 0
      %p133 = por %p131, %p132
      %s135 = sadd.s32 %s134, 1
      %p138 = scmp.eq.s32.totalorder %s16, 1
      %p139 = scmp.ne.s32.totalorder %s134, %s136
      %p140 = scmp.eq.s32.totalorder %s16, 0
      %p141 = por %p139, %p140
      %p142 = scmp.ne.s32.totalorder %s134, %s136
      %p143 = scmp.eq.s32.totalorder %s21, 1
      %p144 = por %p142, %p143
      %p145 = scmp.ne.s32.totalorder %s136, %s137
      %p146 = scmp.eq.s32.totalorder %s21, 0
      %p147 = por %p145, %p146
      %p148 = scmp.ne.s32.totalorder %s136, %s137
      %p149 = scmp.eq.s32.totalorder %s22, 1
      %p150 = por %p148, %p149
      %p152 = scmp.ne.s32.totalorder %s137, %s151
      %p153 = scmp.eq.s32.totalorder %s22, 0
      %p154 = por %p152, %p153
      %s156 = sadd.s32 %s155, 1
      %p159 = scmp.eq.s32.totalorder %s16, 1
      %p160 = scmp.ne.s32.totalorder %s155, %s157
      %p161 = scmp.eq.s32.totalorder %s16, 0
      %p162 = por %p160, %p161
      %p163 = scmp.ne.s32.totalorder %s155, %s157
      %p164 = scmp.eq.s32.totalorder %s21, 1
      %p165 = por %p163, %p164
      %p166 = scmp.ne.s32.totalorder %s157, %s158
      %p167 = scmp.eq.s32.totalorder %s21, 0
      %p168 = por %p166, %p167
      %p169 = scmp.ne.s32.totalorder %s157, %s158
      %p170 = scmp.eq.s32.totalorder %s22, 1
      %p171 = por %p169, %p170
      %p173 = scmp.ne.s32.totalorder %s158, %s172
      %p174 = scmp.eq.s32.totalorder %s22, 0
      %p175 = por %p173, %p174
      %s176 = ssub.s32 %s16, %s23
      %p177 = scmp.eq.s32.totalorder %s176, 0
      %s179 = sadd.s32 %s178, 1
      %s180 = scalar_select %p177, %s178, %s179
      %p183 = pneg %p177
      %p184 = scmp.eq.s32.totalorder %s16, 1
      %p185 = por %p183, %p184
      %p186 = scmp.ne.s32.totalorder %s178, %s181
      %p187 = scmp.eq.s32.totalorder %s16, 0
      %p188 = por %p186, %p187
      %p189 = scmp.ne.s32.totalorder %s178, %s181
      %p190 = scmp.eq.s32.totalorder %s21, 1
      %p191 = por %p189, %p190
      %p192 = scmp.ne.s32.totalorder %s181, %s182
      %p193 = scmp.eq.s32.totalorder %s21, 0
      %p194 = por %p192, %p193
      %p195 = scmp.ne.s32.totalorder %s181, %s182
      %p196 = scmp.eq.s32.totalorder %s22, 1
      %p197 = por %p195, %p196
      %p199 = scmp.ne.s32.totalorder %s182, %s198
      %p200 = scmp.eq.s32.totalorder %s22, 0
      %p201 = por %p199, %p200
      %p202 = scmp.le.s32.totalorder 1, %s16
      %p203 = scmp.lt.s32.totalorder %s16, 3
      %p204 = pnand %p202, %p203
      %p205 = pneg %p204
      // Predicated region
      $region9: #{tpu_custom_call.1} parent=5 // pred_check
        _
      $region10: #{tpu_custom_call.1} parent=5 // pred_check_branch
        %207 = sbr.rel (%p204) target = $region12
      $region11: #{tpu_custom_call.1} parent=5 // pred_region
        %s208 = ssub.s32 %s16, 1
        // Predicated region
        $region13: #{tpu_custom_call.1} parent=11 // pred_check
          %p209 = pneg %p63
        $region14: #{tpu_custom_call.1} parent=11 // pred_check_branch
          %211 = sbr.rel (%p209) target = $region16
        $region15: #{tpu_custom_call.1} parent=11 // pred_region
          _
        $region16: #{tpu_custom_call.1} parent=11 // pred_fallthru
          _
        // Predicated region
        $region17: #{tpu_custom_call.1} parent=11 // pred_check
          %p212 = pneg %p84
        $region18: #{tpu_custom_call.1} parent=11 // pred_check_branch
          %214 = sbr.rel (%p212) target = $region20
        $region19: #{tpu_custom_call.1} parent=11 // pred_region
          _
        $region20: #{tpu_custom_call.1} parent=11 // pred_fallthru
          _
        // Predicated region
        $region21: #{tpu_custom_call.1} parent=11 // pred_check
          %p215 = pneg %p105
        $region22: #{tpu_custom_call.1} parent=11 // pred_check_branch
          %217 = sbr.rel (%p215) target = $region24
        $region23: #{tpu_custom_call.1} parent=11 // pred_region
          _
        $region24: #{tpu_custom_call.1} parent=11 // pred_fallthru
          _
        // Predicated region
        $region25: #{tpu_custom_call.1} parent=11 // pred_check
          %p218 = pneg %p126
        $region26: #{tpu_custom_call.1} parent=11 // pred_check_branch
          %220 = sbr.rel (%p218) target = $region28
        $region27: #{tpu_custom_call.1} parent=11 // pred_region
          _
        $region28: #{tpu_custom_call.1} parent=11 // pred_fallthru
          _
        // Predicated region
        $region29: #{tpu_custom_call.1} parent=11 // pred_check
          %p221 = pneg %p147
        $region30: #{tpu_custom_call.1} parent=11 // pred_check_branch
          %223 = sbr.rel (%p221) target = $region32
        $region31: #{tpu_custom_call.1} parent=11 // pred_region
          _
        $region32: #{tpu_custom_call.1} parent=11 // pred_fallthru
          _
        // Predicated region
        $region33: #{tpu_custom_call.1} parent=11 // pred_check
          %p224 = pneg %p168
        $region34: #{tpu_custom_call.1} parent=11 // pred_check_branch
          %226 = sbr.rel (%p224) target = $region36
        $region35: #{tpu_custom_call.1} parent=11 // pred_region
          _
        $region36: #{tpu_custom_call.1} parent=11 // pred_fallthru
          _
      $region12: #{tpu_custom_call.1} parent=5 // pred_fallthru
        _
      %p227 = scmp.lt.s32.totalorder %s16, 2
      // Predicated region
      $region37: #{tpu_custom_call.1} parent=5 // pred_check
        %p228 = pneg %p227
      $region38: #{tpu_custom_call.1} parent=5 // pred_check_branch
        %230 = sbr.rel (%p228) target = $region40
      $region39: #{tpu_custom_call.1} parent=5 // pred_region
        // Predicated region
        $region41: #{tpu_custom_call.1} parent=39 // pred_check
          %p231 = pneg %p36
        $region42: #{tpu_custom_call.1} parent=39 // pred_check_branch
          %233 = sbr.rel (%p231) target = $region44
        $region43: #{tpu_custom_call.1} parent=39 // pred_region
          %p234 = scmp.lt.s32.totalorder %s16, 1
          %s235 = scalar_select %p234, %s16, 1
          %s236 = smul.addr %s235, 2
          %s237 = smul.addr %s236, 8
          %s238 = scalar_lea.vmem %s0, %s237
        $region44: #{tpu_custom_call.1} parent=39 // pred_fallthru
          _
      $region40: #{tpu_custom_call.1} parent=5 // pred_fallthru
        _
      %p239 = scmp.le.s32.totalorder 1, %s16
      %p240 = scmp.lt.s32.totalorder %s16, 3
      %p241 = pnand %p239, %p240
      %p242 = pneg %p241
      // Predicated region
      $region45: #{tpu_custom_call.1} parent=5 // pred_check
        _
      $region46: #{tpu_custom_call.1} parent=5 // pred_check_branch
        %244 = sbr.rel (%p241) target = $region48
      $region47: #{tpu_custom_call.1} parent=5 // pred_region
        %s245 = ssub.s32 %s16, 1
        %p246 = scmp.lt.s32.totalorder %s21, 1
        %s247 = scalar_select %p246, %s21, 1
        %s248 = smul.addr %s247, 2
        %s249 = smul.addr %s248, 8
        %s250 = scalar_lea.vmem %s0, %s249
        %p251 = pneg %p42
        %p252 = pneg %p39
        %p253 = pneg %p63
        %p254 = pneg %p60
        %p255 = pneg %p84
        %p256 = pneg %p81
        %p257 = pneg %p105
        %p258 = pneg %p102
        %p259 = pneg %p126
        %p260 = pneg %p123
        %p261 = pneg %p147
        %p262 = pneg %p144
        %p263 = pneg %p168
        %p264 = pneg %p165
        %p265 = pneg %p194
        %p266 = pneg %p191
        %s267 = sand.u32 %s181, 1
        %s268 = scalar_lea.sflag [#allocation3], %s267
        %s269 = sand.u32 %s181, 1
        %s270 = smul.addr %s269, 16
        %s271 = scalar_lea.vmem [#allocation2], %s270
        %p272 = scmp.lt.s32.totalorder %s21, 1
        %s273 = scalar_select %p272, %s21, 1
        %s274 = smul.addr %s273, 2
        %s275 = smul.addr %s274, 8
        %s276 = scalar_lea.vmem %s0, %s275
        %v278 = vld [vmem:[%s1] sm:$0xf]
        %v279 = vld [vmem:[%s2] sm:$0xff]
        %v280 = vld [vmem:[%s3] sm:$0xf]
        %v281 = vld [vmem:[%s3 + $0x4] sm:$0xf]
        %v282 = vld [vmem:[%s3 + $0x8] sm:$0xf]
        %v283 = vld [vmem:[%s3 + $0xc] sm:$0xf]
        %v284 = vld [vmem:[%s3 + $0x10] sm:$0xf]
        %v285 = vld [vmem:[%s3 + $0x14] sm:$0xf]
        %v286 = vld [vmem:[%s3 + $0x18] sm:$0xf]
        %v287 = vld [vmem:[%s3 + $0x1c] sm:$0xf]
        %v288 = vld [vmem:[%s3 + $0x20] sm:$0xf]
        %v289 = vld [vmem:[%s3 + $0x24] sm:$0xf]
        %v290 = vld [vmem:[%s3 + $0x28] sm:$0xf]
        %v291 = vld [vmem:[%s3 + $0x2c] sm:$0xf]
        %v292 = vld [vmem:[%s3 + $0x30] sm:$0xf]
        %v293 = vld [vmem:[%s3 + $0x34] sm:$0xf]
        %v294 = vld [vmem:[%s3 + $0x38] sm:$0xf]
        %v295 = vld [vmem:[%s3 + $0x3c] sm:$0xf]
        %v296 = vld [vmem:[%s3 + $0x40] sm:$0xf]
        %v297 = vld [vmem:[%s3 + $0x44] sm:$0xf]
        %v298 = vld [vmem:[%s3 + $0x48] sm:$0xf]
        %v299 = vld [vmem:[%s3 + $0x4c] sm:$0xf]
        %v300 = vld [vmem:[%s3 + $0x50] sm:$0xf]
        %v301 = vld [vmem:[%s3 + $0x54] sm:$0xf]
        %v302 = vld [vmem:[%s3 + $0x58] sm:$0xf]
        %v303 = vld [vmem:[%s3 + $0x5c] sm:$0xf]
        %v304 = vld [vmem:[%s3 + $0x60] sm:$0xf]
        %v305 = vld [vmem:[%s3 + $0x64] sm:$0xf]
        %v306 = vld [vmem:[%s3 + $0x68] sm:$0xf]
        %v307 = vld [vmem:[%s3 + $0x6c] sm:$0xf]
        %v308 = vld [vmem:[%s3 + $0x70] sm:$0xf]
        %v309 = vld [vmem:[%s3 + $0x74] sm:$0xf]
        %v310 = vld [vmem:[%s3 + $0x78] sm:$0xf]
        %v311 = vld [vmem:[%s3 + $0x7c] sm:$0xf]
        %v312 = vld [vmem:[%s4] sm:$0xff]
        %v313 = vld [vmem:[%s4 + $0x8] sm:$0xff]
        %v314 = vld [vmem:[%s5] sm:$0xf]
        %v315 = vld [vmem:[%s5 + $0x4] sm:$0xf]
        %v316 = vld [vmem:[%s5 + $0x8] sm:$0xf]
        %v317 = vld [vmem:[%s5 + $0xc] sm:$0xf]
        %v318 = vld [vmem:[%s5 + $0x10] sm:$0xf]
        %v319 = vld [vmem:[%s5 + $0x14] sm:$0xf]
        %v320 = vld [vmem:[%s5 + $0x18] sm:$0xf]
        %v321 = vld [vmem:[%s5 + $0x1c] sm:$0xf]
        %v322 = vld [vmem:[%s5 + $0x20] sm:$0xf]
        %v323 = vld [vmem:[%s5 + $0x24] sm:$0xf]
        %v324 = vld [vmem:[%s5 + $0x28] sm:$0xf]
        %v325 = vld [vmem:[%s5 + $0x2c] sm:$0xf]
        %v326 = vld [vmem:[%s5 + $0x30] sm:$0xf]
        %v327 = vld [vmem:[%s5 + $0x34] sm:$0xf]
        %v328 = vld [vmem:[%s5 + $0x38] sm:$0xf]
        %v329 = vld [vmem:[%s5 + $0x3c] sm:$0xf]
        %v330 = vld [vmem:[%s5 + $0x40] sm:$0xf]
        %v331 = vld [vmem:[%s5 + $0x44] sm:$0xf]
        %v332 = vld [vmem:[%s5 + $0x48] sm:$0xf]
        %v333 = vld [vmem:[%s5 + $0x4c] sm:$0xf]
        %v334 = vld [vmem:[%s5 + $0x50] sm:$0xf]
        %v335 = vld [vmem:[%s5 + $0x54] sm:$0xf]
        %v336 = vld [vmem:[%s5 + $0x58] sm:$0xf]
        %v337 = vld [vmem:[%s5 + $0x5c] sm:$0xf]
        %v338 = vld [vmem:[%s5 + $0x60] sm:$0xf]
        %v339 = vld [vmem:[%s5 + $0x64] sm:$0xf]
        %v340 = vld [vmem:[%s5 + $0x68] sm:$0xf]
        %v341 = vld [vmem:[%s5 + $0x6c] sm:$0xf]
        %v342 = vld [vmem:[%s5 + $0x70] sm:$0xf]
        %v343 = vld [vmem:[%s5 + $0x74] sm:$0xf]
        %v344 = vld [vmem:[%s5 + $0x78] sm:$0xf]
        %v345 = vld [vmem:[%s5 + $0x7c] sm:$0xf]
        %v346 = vld [vmem:[%s6] sm:$0xff]
        %v347 = vld [vmem:[%s6 + $0x8] sm:$0xff]
        %v348 = vld [vmem:[%s276] sm:$0xff]
        %v349 = vld [vmem:[%s276 + $0x8] sm:$0xff]
        %v350 = vpack.c.bf16 %v348, %v348
        %v351 = vpack.c.bf16 %v349, %v349
        %353 = vset.pattern.permute.xlu0 0
        %354 = vperm.xlu0 %353, %v279
        %v355 = vpop.permute.xlu0 %354
        %vm357 = vcmask 64512
        %v359 = vsel %vm357, %v278, 0
        %vm361 = vcmask 1043456
        %v363 = vsel %vm361, %v350, 0
        %v366 = vsel %vm361, %v351, 0
        %368 = vmatpush.bf16.msra.mxu0 0
        %369 = vmatpush.bf16.msra.mxu0 0
        %370 = vmatpush.bf16.msra.mxu0 0
        %371 = vmatpush.bf16.msra.mxu0 0
        %372 = vmatpush.bf16.msra.mxu0 0
        %373 = vmatpush.bf16.msra.mxu0 0
        %374 = vmatpush.bf16.msra.mxu0 0
        %375 = vmatpush.bf16.msra.mxu0 %v363
        %376 = vmatmul.bf16.gmra.mxu0 %v359
        %v377 = vpop.f32.mrf.mxu0
        %v378 = vadd.f32 %v355, %v377
        %v379 = vpop.f32.mrf.mxu0
        %380 = vdwg.mxu0
        %381 = vmatpush.bf16.msra.mxu0 0
        %382 = vmatpush.bf16.msra.mxu0 0
        %383 = vmatpush.bf16.msra.mxu0 0
        %384 = vmatpush.bf16.msra.mxu0 0
        %385 = vmatpush.bf16.msra.mxu0 0
        %386 = vmatpush.bf16.msra.mxu0 0
        %387 = vmatpush.bf16.msra.mxu0 0
        %388 = vmatpush.bf16.msra.mxu0 %v366
        %389 = vmatmul.bf16.gmra.mxu0 %v359
        %v390 = vpop.f32.mrf.mxu0
        %v391 = vadd.f32 %v355, %v390
        %v392 = vpop.f32.mrf.mxu0
        %393 = vdwg.mxu0
        %v394 = vpack.c.bf16 %v378, %v378
        %v395 = vpack.c.bf16 %v391, %v391
        %v428 = vunpack.c.l.b16 %v280
        %v429 = vunpack.c.l.b16 %v281
        %v430 = vunpack.c.l.b16 %v282
        %v431 = vunpack.c.l.b16 %v283
        %v432 = vunpack.c.l.b16 %v284
        %v433 = vunpack.c.l.b16 %v285
        %v434 = vunpack.c.l.b16 %v286
        %v435 = vunpack.c.l.b16 %v287
        %v436 = vunpack.c.l.b16 %v288
        %v437 = vunpack.c.l.b16 %v289
        %v438 = vunpack.c.l.b16 %v290
        %v439 = vunpack.c.l.b16 %v291
        %v440 = vunpack.c.l.b16 %v292
        %v441 = vunpack.c.l.b16 %v293
        %v442 = vunpack.c.l.b16 %v294
        %v443 = vunpack.c.l.b16 %v295
        %v444 = vunpack.c.l.b16 %v296
        %v445 = vunpack.c.l.b16 %v297
        %v446 = vunpack.c.l.b16 %v298
        %v447 = vunpack.c.l.b16 %v299
        %v448 = vunpack.c.l.b16 %v300
        %v449 = vunpack.c.l.b16 %v301
        %v450 = vunpack.c.l.b16 %v302
        %v451 = vunpack.c.l.b16 %v303
        %v452 = vunpack.c.l.b16 %v304
        %v453 = vunpack.c.l.b16 %v305
        %v454 = vunpack.c.l.b16 %v306
        %v455 = vunpack.c.l.b16 %v307
        %v456 = vunpack.c.l.b16 %v308
        %v457 = vunpack.c.l.b16 %v309
        %v458 = vunpack.c.l.b16 %v310
        %v459 = vunpack.c.l.b16 %v311
        %v460 = vpack.c.b16 %v429, %v428
        %v461 = vpack.c.b16 %v431, %v430
        %v462 = vpack.c.b16 %v433, %v432
        %v463 = vpack.c.b16 %v435, %v434
        %v464 = vpack.c.b16 %v437, %v436
        %v465 = vpack.c.b16 %v439, %v438
        %v466 = vpack.c.b16 %v441, %v440
        %v467 = vpack.c.b16 %v443, %v442
        %v468 = vpack.c.b16 %v445, %v444
        %v469 = vpack.c.b16 %v447, %v446
        %v470 = vpack.c.b16 %v449, %v448
        %v471 = vpack.c.b16 %v451, %v450
        %v472 = vpack.c.b16 %v453, %v452
        %v473 = vpack.c.b16 %v455, %v454
        %v474 = vpack.c.b16 %v457, %v456
        %v475 = vpack.c.b16 %v459, %v458
        %492 = vmatpush.bf16.msra.mxu0 %v467
        %493 = vmatpush.bf16.msra.mxu0 %v466
        %494 = vmatpush.bf16.msra.mxu0 %v465
        %495 = vmatpush.bf16.msra.mxu0 %v464
        %496 = vmatpush.bf16.msra.mxu0 %v463
        %497 = vmatpush.bf16.msra.mxu0 %v462
        %498 = vmatpush.bf16.msra.mxu0 %v461
        %499 = vmatpush.bf16.msra.mxu0 %v460
        %500 = vmatmul.bf16.gmra.mxu0 %v394
        %v501 = vpop.f32.mrf.mxu0
        %v502 = vadd.f32 0.0, %v501
        %v503 = vpop.f32.mrf.mxu0
        %504 = vdwg.mxu0
        %505 = vmatpush.bf16.msra.mxu0 %v475
        %506 = vmatpush.bf16.msra.mxu0 %v474
        %507 = vmatpush.bf16.msra.mxu0 %v473
        %508 = vmatpush.bf16.msra.mxu0 %v472
        %509 = vmatpush.bf16.msra.mxu0 %v471
        %510 = vmatpush.bf16.msra.mxu0 %v470
        %511 = vmatpush.bf16.msra.mxu0 %v469
        %512 = vmatpush.bf16.msra.mxu0 %v468
        %513 = vmatmul.bf16.gmra.mxu0 %v395
        %v514 = vpop.f32.mrf.mxu0
        %v515 = vadd.f32 %v502, %v514
        %v516 = vpop.f32.mrf.mxu0
        %517 = vdwg.mxu0
        %v518 = vmul.f32 %v515, 0.0625
        %v519 = vxor.u32 %v518, 2147483648
        %v520 = vmul.f32 %v519, 1.442695
        %v521 = vpow.pop %v520
        %v522 = vadd.f32 %v521, 1.0
        %v523 = vrcp.pop %v522
        %v524 = vmul.f32 %v522, %v523
        %v525 = vsub.f32 1.0, %v524
        %v526 = vmul.f32 %v523, %v525
        %v527 = vadd.f32 %v523, %v526
        %vm528 = vweird.f32 %v522
        %vm529 = vweird.f32 %v523
        %vm530 = vmor %vm528, %vm529
        %v531 = vsel %vm530, %v523, %v527
        %v532 = vand.u32 2147483647, %v522
        %vm533 = vcmp.eq.f32.partialorder %v532, 8.507059e+37
        %v534 = vand.u32 %v522, 2147483648
        %v535 = vor.u32 1.1754944e-38, %v534
        %v536 = vsel %vm533, %v535, %v531
        %v537 = vmul.f32 1.0, %v536
        %v570 = vunpack.c.l.b16 %v314
        %v571 = vunpack.c.l.b16 %v315
        %v572 = vunpack.c.l.b16 %v316
        %v573 = vunpack.c.l.b16 %v317
        %v574 = vunpack.c.l.b16 %v318
        %v575 = vunpack.c.l.b16 %v319
        %v576 = vunpack.c.l.b16 %v320
        %v577 = vunpack.c.l.b16 %v321
        %v578 = vunpack.c.l.b16 %v322
        %v579 = vunpack.c.l.b16 %v323
        %v580 = vunpack.c.l.b16 %v324
        %v581 = vunpack.c.l.b16 %v325
        %v582 = vunpack.c.l.b16 %v326
        %v583 = vunpack.c.l.b16 %v327
        %v584 = vunpack.c.l.b16 %v328
        %v585 = vunpack.c.l.b16 %v329
        %v586 = vunpack.c.l.b16 %v330
        %v587 = vunpack.c.l.b16 %v331
        %v588 = vunpack.c.l.b16 %v332
        %v589 = vunpack.c.l.b16 %v333
        %v590 = vunpack.c.l.b16 %v334
        %v591 = vunpack.c.l.b16 %v335
        %v592 = vunpack.c.l.b16 %v336
        %v593 = vunpack.c.l.b16 %v337
        %v594 = vunpack.c.l.b16 %v338
        %v595 = vunpack.c.l.b16 %v339
        %v596 = vunpack.c.l.b16 %v340
        %v597 = vunpack.c.l.b16 %v341
        %v598 = vunpack.c.l.b16 %v342
        %v599 = vunpack.c.l.b16 %v343
        %v600 = vunpack.c.l.b16 %v344
        %v601 = vunpack.c.l.b16 %v345
        %v602 = vpack.c.b16 %v571, %v570
        %v603 = vpack.c.b16 %v573, %v572
        %v604 = vpack.c.b16 %v575, %v574
        %v605 = vpack.c.b16 %v577, %v576
        %v606 = vpack.c.b16 %v579, %v578
        %v607 = vpack.c.b16 %v581, %v580
        %v608 = vpack.c.b16 %v583, %v582
        %v609 = vpack.c.b16 %v585, %v584
        %v610 = vpack.c.b16 %v587, %v586
        %v611 = vpack.c.b16 %v589, %v588
        %v612 = vpack.c.b16 %v591, %v590
        %v613 = vpack.c.b16 %v593, %v592
        %v614 = vpack.c.b16 %v595, %v594
        %v615 = vpack.c.b16 %v597, %v596
        %v616 = vpack.c.b16 %v599, %v598
        %v617 = vpack.c.b16 %v601, %v600
        %634 = vmatpush.bf16.msra.mxu0 %v609
        %635 = vmatpush.bf16.msra.mxu0 %v608
        %636 = vmatpush.bf16.msra.mxu0 %v607
        %637 = vmatpush.bf16.msra.mxu0 %v606
        %638 = vmatpush.bf16.msra.mxu0 %v605
        %639 = vmatpush.bf16.msra.mxu0 %v604
        %640 = vmatpush.bf16.msra.mxu0 %v603
        %641 = vmatpush.bf16.msra.mxu0 %v602
        %642 = vmatmul.bf16.gmra.mxu0 %v394
        %v643 = vpop.f32.mrf.mxu0
        %v644 = vadd.f32 0.0, %v643
        %v645 = vpop.f32.mrf.mxu0
        %646 = vdwg.mxu0
        %647 = vmatpush.bf16.msra.mxu0 %v617
        %648 = vmatpush.bf16.msra.mxu0 %v616
        %649 = vmatpush.bf16.msra.mxu0 %v615
        %650 = vmatpush.bf16.msra.mxu0 %v614
        %651 = vmatpush.bf16.msra.mxu0 %v613
        %652 = vmatpush.bf16.msra.mxu0 %v612
        %653 = vmatpush.bf16.msra.mxu0 %v611
        %654 = vmatpush.bf16.msra.mxu0 %v610
        %655 = vmatmul.bf16.gmra.mxu0 %v395
        %v656 = vpop.f32.mrf.mxu0
        %v657 = vadd.f32 %v644, %v656
        %v658 = vpop.f32.mrf.mxu0
        %659 = vdwg.mxu0
        %v660 = vmul.f32 %v657, 0.0625
        %v661 = vxor.u32 %v660, 2147483648
        %v662 = vmul.f32 %v661, 1.442695
        %v663 = vpow.pop %v662
        %v664 = vadd.f32 %v663, 1.0
        %v665 = vrcp.pop %v664
        %v666 = vmul.f32 %v664, %v665
        %v667 = vsub.f32 1.0, %v666
        %v668 = vmul.f32 %v665, %v667
        %v669 = vadd.f32 %v665, %v668
        %vm670 = vweird.f32 %v664
        %vm671 = vweird.f32 %v665
        %vm672 = vmor %vm670, %vm671
        %v673 = vsel %vm672, %v665, %v669
        %v674 = vand.u32 2147483647, %v664
        %vm675 = vcmp.eq.f32.partialorder %v674, 8.507059e+37
        %v676 = vand.u32 %v664, 2147483648
        %v677 = vor.u32 1.1754944e-38, %v676
        %v678 = vsel %vm675, %v677, %v673
        %v679 = vmul.f32 1.0, %v678
        %v680 = vpack.c.bf16 %v537, %v537
        %v683 = vunpack.c.l.b16 %v312
        %v684 = vunpack.c.h.b16 %v312
        %v685 = vunpack.c.l.b16 %v313
        %v686 = vunpack.c.h.b16 %v313
        %v687 = vpack.c.b16 %v685, %v683
        %v688 = vpack.c.b16 %v686, %v684
        %vm691 = vcmask 130048
        %v693 = vsel %vm691, %v680, 0
        %695 = vmatpush.bf16.msra.mxu0 0
        %696 = vmatpush.bf16.msra.mxu0 0
        %697 = vmatpush.bf16.msra.mxu0 0
        %698 = vmatpush.bf16.msra.mxu0 0
        %699 = vmatpush.bf16.msra.mxu0 0
        %700 = vmatpush.bf16.msra.mxu0 0
        %701 = vmatpush.bf16.msra.mxu0 0
        %702 = vmatpush.bf16.msra.mxu0 %v687
        %703 = vmatmul.bf16.gmra.mxu0 %v693
        %v704 = vpop.f32.mrf.mxu0
        %v705 = vadd.f32 0.0, %v704
        %v706 = vpop.f32.mrf.mxu0
        %707 = vdwg.mxu0
        %708 = vmatpush.bf16.msra.mxu0 0
        %709 = vmatpush.bf16.msra.mxu0 0
        %710 = vmatpush.bf16.msra.mxu0 0
        %711 = vmatpush.bf16.msra.mxu0 0
        %712 = vmatpush.bf16.msra.mxu0 0
        %713 = vmatpush.bf16.msra.mxu0 0
        %714 = vmatpush.bf16.msra.mxu0 0
        %715 = vmatpush.bf16.msra.mxu0 %v688
        %716 = vmatmul.bf16.gmra.mxu0 %v693
        %v717 = vpop.f32.mrf.mxu0
        %v718 = vadd.f32 0.0, %v717
        %v719 = vpop.f32.mrf.mxu0
        %720 = vdwg.mxu0
        %v721 = vpack.c.bf16 %v679, %v679
        %v724 = vunpack.c.l.b16 %v346
        %v725 = vunpack.c.h.b16 %v346
        %v726 = vunpack.c.l.b16 %v347
        %v727 = vunpack.c.h.b16 %v347
        %v728 = vpack.c.b16 %v726, %v724
        %v729 = vpack.c.b16 %v727, %v725
        %v733 = vsel %vm691, %v721, 0
        %735 = vmatpush.bf16.msra.mxu0 0
        %736 = vmatpush.bf16.msra.mxu0 0
        %737 = vmatpush.bf16.msra.mxu0 0
        %738 = vmatpush.bf16.msra.mxu0 0
        %739 = vmatpush.bf16.msra.mxu0 0
        %740 = vmatpush.bf16.msra.mxu0 0
        %741 = vmatpush.bf16.msra.mxu0 0
        %742 = vmatpush.bf16.msra.mxu0 %v728
        %743 = vmatmul.bf16.gmra.mxu0 %v733
        %v744 = vpop.f32.mrf.mxu0
        %v745 = vadd.f32 0.0, %v744
        %v746 = vpop.f32.mrf.mxu0
        %747 = vdwg.mxu0
        %748 = vmatpush.bf16.msra.mxu0 0
        %749 = vmatpush.bf16.msra.mxu0 0
        %750 = vmatpush.bf16.msra.mxu0 0
        %751 = vmatpush.bf16.msra.mxu0 0
        %752 = vmatpush.bf16.msra.mxu0 0
        %753 = vmatpush.bf16.msra.mxu0 0
        %754 = vmatpush.bf16.msra.mxu0 0
        %755 = vmatpush.bf16.msra.mxu0 %v729
        %756 = vmatmul.bf16.gmra.mxu0 %v733
        %v757 = vpop.f32.mrf.mxu0
        %v758 = vadd.f32 0.0, %v757
        %v759 = vpop.f32.mrf.mxu0
        %760 = vdwg.mxu0
        %v761 = vmul.f32 %v705, %v745
        %v762 = vmul.f32 %v718, %v758
        %v763 = vmul.f32 %v378, %v761
        %v764 = vmul.f32 %v391, %v762
        %v767 = vrot.slane %v761, 4
        %v768 = vrot.slane %v762, 4
        %v771 = vmul.f32 %v763, %v767
        %v772 = vmul.f32 %v764, %v768
        %v775 = vrot.slane %v771, 4
        %v776 = vrot.slane %v772, 4
        %v779 = vsel %vm361, %v763, %v775
        %v780 = vsel %vm361, %v764, %v776
        %781 = vst [vmem:[%s271] sm:$0xff] %v779
        %782 = vst [vmem:[%s271 + $0x8] sm:$0xff] %v780
        %s783 = sand.u32 %s181, 1
        %s784 = scalar_lea.sflag [#allocation3], %s783
        %s785 = sand.u32 %s181, 1
        %s786 = smul.addr %s785, 16
        %s787 = scalar_lea.vmem [#allocation2], %s786
        // Predicated region
        $region49: #{tpu_custom_call.1} parent=47 // pred_check
          %p788 = pneg %p191
        $region50: #{tpu_custom_call.1} parent=47 // pred_check_branch
          %790 = sbr.rel (%p788) target = $region52
        $region51: #{tpu_custom_call.1} parent=47 // pred_region
          %792 = vsyncadd %s784, 0
          %s793 = smul.addr %s21, 2
          %s794 = smul.addr %s793, 8
          %s795 = scalar_lea.hbm %s7, %s794
          %s797 = sshll.u32 %s787, 4
          %s798 = int_to_ptr.vmem [resolvable:$true] %s797
          %s799 = sshll.u32 %s795, 4
          %s800 = int_to_ptr.hbm [resolvable:$true] %s799
          %802 = dma.vmem_to_hbm [thread:$0]  %s798, 256, %s800, %s784
        $region52: #{tpu_custom_call.1} parent=47 // pred_fallthru
          _
      $region48: #{tpu_custom_call.1} parent=5 // pred_fallthru
        _
      %p803 = scmp.le.s32.totalorder 2, %s16
      // Predicated region
      $region53: #{tpu_custom_call.1} parent=5 // pred_check
        %p804 = pneg %p803
      $region54: #{tpu_custom_call.1} parent=5 // pred_check_branch
        %806 = sbr.rel (%p804) target = $region56
      $region55: #{tpu_custom_call.1} parent=5 // pred_region
        %s807 = ssub.s32 %s16, 2
        // Predicated region
        $region57: #{tpu_custom_call.1} parent=55 // pred_check
          %p808 = pneg %p197
        $region58: #{tpu_custom_call.1} parent=55 // pred_check_branch
          %810 = sbr.rel (%p808) target = $region60
        $region59: #{tpu_custom_call.1} parent=55 // pred_region
          %s811 = sand.u32 %s182, 1
          %s812 = scalar_lea.sflag [#allocation3], %s811
          %s813 = sand.u32 %s182, 1
          %s814 = smul.addr %s813, 16
          %s815 = scalar_lea.vmem [#allocation2], %s814
          %817 = dma.done %s812, 256
        $region60: #{tpu_custom_call.1} parent=55 // pred_fallthru
          _
      $region56: #{tpu_custom_call.1} parent=5 // pred_fallthru
        _
    $region6: #{tpu_custom_call.1} parent=1 // loop_footer
      %s20 = sadd.s32 1, %s16
    $region7: #{tpu_custom_call.1} parent=1 // loop_footer_branch
      %15 = sbr.rel target = $region3
    $region8: #{tpu_custom_call.1} parent=1 // loop_exit
      _
    %818 = vsyncpa [#allocation3], 1
    %s819 = scalar_lea.sflag [#allocation3], 1
    %820 = vsyncpa %s819, 1

// kernel: tpu_custom_call.1
$region0: #{tpu_custom_call.1}
  #allocation0 [shape = 'u32[]', space=smem, size = 0x4, offset = 0x4, fixed_abs, tag = 'smem constant byte address 0x4 - core index']
  #allocation1 [shape = 'u32[72,128]{1,0:T(1,128)}', space=vmem, size = 0x9000, scoped, tag = 'internal scratch']
  %s0 = inlined_call_operand.vmem [shape: f32[2,8,256], index: 0, kind: input, shape index: {}]
  %s1 = inlined_call_operand.vmem [shape: bf16[8,8], index: 1, kind: input, shape index: {}]
  %s2 = inlined_call_operand.vmem [shape: f32[8,1], index: 2, kind: input, shape index: {}]
  %s3 = inlined_call_operand.vmem [shape: bf16[256,16], index: 3, kind: input, shape index: {}]
  %s4 = inlined_call_operand.vmem [shape: bf16[16,256], index: 4, kind: input, shape index: {}]
  %s5 = inlined_call_operand.vmem [shape: bf16[256,16], index: 5, kind: input, shape index: {}]
  %s6 = inlined_call_operand.vmem [shape: bf16[16,256], index: 6, kind: input, shape index: {}]
  %s7 = inlined_call_operand.hbm [shape: f32[2,8,256], index: 7, kind: output, shape index: {}]
  %s8 = sld [smem:[#allocation0]]
  $region61: #{tpu_custom_call.1} parent=0
    _
  %s10 = ssub.s32 1, %s8
  %s11 = scalar_select 0, %s10, %s8
  $region1: #{tpu_custom_call.1} parent=0
    #allocation2 [shape = 'u8[16384]{0}', space=vmem, size = 0x4000, scoped, tag = 'output window, operand 0']
    #allocation3 [shape = 's32[2]{0}', space=sflag, size = 0x8, scoped, tag = 'scoped memory for tpu_custom_call.1']
    %12 = vsyncpa [#allocation3], 0
    %s13 = scalar_lea.sflag [#allocation3], 1
    %14 = vsyncpa %s13, 0
    loop: start=0, step=1, limit=4
    $region2: #{tpu_custom_call.1} parent=1 // loop_pre_header
      _
    $region3: #{tpu_custom_call.1} parent=1 // loop_header
      %s16 = sphi 0, %s20
      %p17 = scmp.ge.s32.totalorder %s16, 4
      %s26 = sphi 0, %s28
      %s29 = sphi 0, %s26
      %s30 = sphi 0, %s29
      %s46 = sphi 0, %s30
      %s50 = sphi 0, %s50
      %s52 = sphi 0, %s50
      %s53 = sphi 0, %s52
      %s67 = sphi 0, %s53
      %s71 = sphi 0, %s71
      %s73 = sphi 0, %s71
      %s74 = sphi 0, %s73
      %s88 = sphi 0, %s74
      %s92 = sphi 0, %s92
      %s94 = sphi 0, %s92
      %s95 = sphi 0, %s94
      %s109 = sphi 0, %s95
      %s113 = sphi 0, %s113
      %s115 = sphi 0, %s113
      %s116 = sphi 0, %s115
      %s130 = sphi 0, %s116
      %s134 = sphi 0, %s134
      %s136 = sphi 0, %s134
      %s137 = sphi 0, %s136
      %s151 = sphi 0, %s137
      %s155 = sphi 0, %s155
      %s157 = sphi 0, %s155
      %s158 = sphi 0, %s157
      %s172 = sphi 0, %s158
      %s178 = sphi 0, %s180
      %s181 = sphi 0, %s178
      %s182 = sphi 0, %s181
      %s198 = sphi 0, %s182
    $region4: #{tpu_custom_call.1} parent=1 // loop_header_branch
      %19 = sbr.rel (%p17) target = $region8
    $region5: #{tpu_custom_call.1} parent=1 // loop_body
      %s21 = ssub.s32 %s16, 1
      %s22 = ssub.s32 %s16, 2
      %s23 = sadd.s32 %s16, 1
      %s24 = ssub.s32 %s16, %s23
      %p25 = scmp.eq.s32.totalorder %s24, 0
      %s27 = sadd.s32 %s26, 1
      %s28 = scalar_select %p25, %s26, %s27
      %p31 = pneg %p25
      %p32 = scmp.eq.s32.totalorder %s16, 1
      %p33 = por %p31, %p32
      %p34 = scmp.ne.s32.totalorder %s26, %s29
      %p35 = scmp.eq.s32.totalorder %s16, 0
      %p36 = por %p34, %p35
      %p37 = scmp.ne.s32.totalorder %s26, %s29
      %p38 = scmp.eq.s32.totalorder %s21, 1
      %p39 = por %p37, %p38
      %p40 = scmp.ne.s32.totalorder %s29, %s30
      %p41 = scmp.eq.s32.totalorder %s21, 0
      %p42 = por %p40, %p41
      %p43 = scmp.ne.s32.totalorder %s29, %s30
      %p44 = scmp.eq.s32.totalorder %s22, 1
      %p45 = por %p43, %p44
      %p47 = scmp.ne.s32.totalorder %s30, %s46
      %p48 = scmp.eq.s32.totalorder %s22, 0
      %p49 = por %p47, %p48
      %s51 = sadd.s32 %s50, 1
      %p54 = scmp.eq.s32.totalorder %s16, 1
      %p55 = scmp.ne.s32.totalorder %s50, %s52
      %p56 = scmp.eq.s32.totalorder %s16, 0
      %p57 = por %p55, %p56
      %p58 = scmp.ne.s32.totalorder %s50, %s52
      %p59 = scmp.eq.s32.totalorder %s21, 1
      %p60 = por %p58, %p59
      %p61 = scmp.ne.s32.totalorder %s52, %s53
      %p62 = scmp.eq.s32.totalorder %s21, 0
      %p63 = por %p61, %p62
      %p64 = scmp.ne.s32.totalorder %s52, %s53
      %p65 = scmp.eq.s32.totalorder %s22, 1
      %p66 = por %p64, %p65
      %p68 = scmp.ne.s32.totalorder %s53, %s67
      %p69 = scmp.eq.s32.totalorder %s22, 0
      %p70 = por %p68, %p69
      %s72 = sadd.s32 %s71, 1
      %p75 = scmp.eq.s32.totalorder %s16, 1
      %p76 = scmp.ne.s32.totalorder %s71, %s73
      %p77 = scmp.eq.s32.totalorder %s16, 0
      %p78 = por %p76, %p77
      %p79 = scmp.ne.s32.totalorder %s71, %s73
      %p80 = scmp.eq.s32.totalorder %s21, 1
      %p81 = por %p79, %p80
      %p82 = scmp.ne.s32.totalorder %s73, %s74
      %p83 = scmp.eq.s32.totalorder %s21, 0
      %p84 = por %p82, %p83
      %p85 = scmp.ne.s32.totalorder %s73, %s74
      %p86 = scmp.eq.s32.totalorder %s22, 1
      %p87 = por %p85, %p86
      %p89 = scmp.ne.s32.totalorder %s74, %s88
      %p90 = scmp.eq.s32.totalorder %s22, 0
      %p91 = por %p89, %p90
      %s93 = sadd.s32 %s92, 1
      %p96 = scmp.eq.s32.totalorder %s16, 1
      %p97 = scmp.ne.s32.totalorder %s92, %s94
      %p98 = scmp.eq.s32.totalorder %s16, 0
      %p99 = por %p97, %p98
      %p100 = scmp.ne.s32.totalorder %s92, %s94
      %p101 = scmp.eq.s32.totalorder %s21, 1
      %p102 = por %p100, %p101
      %p103 = scmp.ne.s32.totalorder %s94, %s95
      %p104 = scmp.eq.s32.totalorder %s21, 0
      %p105 = por %p103, %p104
      %p106 = scmp.ne.s32.totalorder %s94, %s95
      %p107 = scmp.eq.s32.totalorder %s22, 1
      %p108 = por %p106, %p107
      %p110 = scmp.ne.s32.totalorder %s95, %s109
      %p111 = scmp.eq.s32.totalorder %s22, 0
      %p112 = por %p110, %p111
      %s114 = sadd.s32 %s113, 1
      %p117 = scmp.eq.s32.totalorder %s16, 1
      %p118 = scmp.ne.s32.totalorder %s113, %s115
      %p119 = scmp.eq.s32.totalorder %s16, 0
      %p120 = por %p118, %p119
      %p121 = scmp.ne.s32.totalorder %s113, %s115
      %p122 = scmp.eq.s32.totalorder %s21, 1
      %p123 = por %p121, %p122
      %p124 = scmp.ne.s32.totalorder %s115, %s116
      %p125 = scmp.eq.s32.totalorder %s21, 0
      %p126 = por %p124, %p125
      %p127 = scmp.ne.s32.totalorder %s115, %s116
      %p128 = scmp.eq.s32.totalorder %s22, 1
      %p129 = por %p127, %p128
      %p131 = scmp.ne.s32.totalorder %s116, %s130
      %p132 = scmp.eq.s32.totalorder %s22, 0
      %p133 = por %p131, %p132
      %s135 = sadd.s32 %s134, 1
      %p138 = scmp.eq.s32.totalorder %s16, 1
      %p139 = scmp.ne.s32.totalorder %s134, %s136
      %p140 = scmp.eq.s32.totalorder %s16, 0
      %p141 = por %p139, %p140
      %p142 = scmp.ne.s32.totalorder %s134, %s136
      %p143 = scmp.eq.s32.totalorder %s21, 1
      %p144 = por %p142, %p143
      %p145 = scmp.ne.s32.totalorder %s136, %s137
      %p146 = scmp.eq.s32.totalorder %s21, 0
      %p147 = por %p145, %p146
      %p148 = scmp.ne.s32.totalorder %s136, %s137
      %p149 = scmp.eq.s32.totalorder %s22, 1
      %p150 = por %p148, %p149
      %p152 = scmp.ne.s32.totalorder %s137, %s151
      %p153 = scmp.eq.s32.totalorder %s22, 0
      %p154 = por %p152, %p153
      %s156 = sadd.s32 %s155, 1
      %p159 = scmp.eq.s32.totalorder %s16, 1
      %p160 = scmp.ne.s32.totalorder %s155, %s157
      %p161 = scmp.eq.s32.totalorder %s16, 0
      %p162 = por %p160, %p161
      %p163 = scmp.ne.s32.totalorder %s155, %s157
      %p164 = scmp.eq.s32.totalorder %s21, 1
      %p165 = por %p163, %p164
      %p166 = scmp.ne.s32.totalorder %s157, %s158
      %p167 = scmp.eq.s32.totalorder %s21, 0
      %p168 = por %p166, %p167
      %p169 = scmp.ne.s32.totalorder %s157, %s158
      %p170 = scmp.eq.s32.totalorder %s22, 1
      %p171 = por %p169, %p170
      %p173 = scmp.ne.s32.totalorder %s158, %s172
      %p174 = scmp.eq.s32.totalorder %s22, 0
      %p175 = por %p173, %p174
      %s176 = ssub.s32 %s16, %s23
      %p177 = scmp.eq.s32.totalorder %s176, 0
      %s179 = sadd.s32 %s178, 1
      %s180 = scalar_select %p177, %s178, %s179
      %p183 = pneg %p177
      %p184 = scmp.eq.s32.totalorder %s16, 1
      %p185 = por %p183, %p184
      %p186 = scmp.ne.s32.totalorder %s178, %s181
      %p187 = scmp.eq.s32.totalorder %s16, 0
      %p188 = por %p186, %p187
      %p189 = scmp.ne.s32.totalorder %s178, %s181
      %p190 = scmp.eq.s32.totalorder %s21, 1
      %p191 = por %p189, %p190
      %p192 = scmp.ne.s32.totalorder %s181, %s182
      %p193 = scmp.eq.s32.totalorder %s21, 0
      %p194 = por %p192, %p193
      %p195 = scmp.ne.s32.totalorder %s181, %s182
      %p196 = scmp.eq.s32.totalorder %s22, 1
      %p197 = por %p195, %p196
      %p199 = scmp.ne.s32.totalorder %s182, %s198
      %p200 = scmp.eq.s32.totalorder %s22, 0
      %p201 = por %p199, %p200
      %p202 = scmp.le.s32.totalorder 1, %s16
      %p203 = scmp.lt.s32.totalorder %s16, 3
      %p204 = pnand %p202, %p203
      %p205 = pneg %p204
      // Predicated region
      $region9: #{tpu_custom_call.1} parent=5 // pred_check
        _
      $region10: #{tpu_custom_call.1} parent=5 // pred_check_branch
        %207 = sbr.rel (%p204) target = $region12
      $region11: #{tpu_custom_call.1} parent=5 // pred_region
        %s208 = ssub.s32 %s16, 1
        // Predicated region
        $region13: #{tpu_custom_call.1} parent=11 // pred_check
          %p209 = pneg %p63
        $region14: #{tpu_custom_call.1} parent=11 // pred_check_branch
          %211 = sbr.rel (%p209) target = $region16
        $region15: #{tpu_custom_call.1} parent=11 // pred_region
          _
        $region16: #{tpu_custom_call.1} parent=11 // pred_fallthru
          _
        // Predicated region
        $region17: #{tpu_custom_call.1} parent=11 // pred_check
          %p212 = pneg %p84
        $region18: #{tpu_custom_call.1} parent=11 // pred_check_branch
          %214 = sbr.rel (%p212) target = $region20
        $region19: #{tpu_custom_call.1} parent=11 // pred_region
          _
        $region20: #{tpu_custom_call.1} parent=11 // pred_fallthru
          _
        // Predicated region
        $region21: #{tpu_custom_call.1} parent=11 // pred_check
          %p215 = pneg %p105
        $region22: #{tpu_custom_call.1} parent=11 // pred_check_branch
          %217 = sbr.rel (%p215) target = $region24
        $region23: #{tpu_custom_call.1} parent=11 // pred_region
          _
        $region24: #{tpu_custom_call.1} parent=11 // pred_fallthru
          _
        // Predicated region
        $region25: #{tpu_custom_call.1} parent=11 // pred_check
          %p218 = pneg %p126
        $region26: #{tpu_custom_call.1} parent=11 // pred_check_branch
          %220 = sbr.rel (%p218) target = $region28
        $region27: #{tpu_custom_call.1} parent=11 // pred_region
          _
        $region28: #{tpu_custom_call.1} parent=11 // pred_fallthru
          _
        // Predicated region
        $region29: #{tpu_custom_call.1} parent=11 // pred_check
          %p221 = pneg %p147
        $region30: #{tpu_custom_call.1} parent=11 // pred_check_branch
          %223 = sbr.rel (%p221) target = $region32
        $region31: #{tpu_custom_call.1} parent=11 // pred_region
          _
        $region32: #{tpu_custom_call.1} parent=11 // pred_fallthru
          _
        // Predicated region
        $region33: #{tpu_custom_call.1} parent=11 // pred_check
          %p224 = pneg %p168
        $region34: #{tpu_custom_call.1} parent=11 // pred_check_branch
          %226 = sbr.rel (%p224) target = $region36
        $region35: #{tpu_custom_call.1} parent=11 // pred_region
          _
        $region36: #{tpu_custom_call.1} parent=11 // pred_fallthru
          _
      $region12: #{tpu_custom_call.1} parent=5 // pred_fallthru
        _
      %p227 = scmp.lt.s32.totalorder %s16, 2
      // Predicated region
      $region37: #{tpu_custom_call.1} parent=5 // pred_check
        %p228 = pneg %p227
      $region38: #{tpu_custom_call.1} parent=5 // pred_check_branch
        %230 = sbr.rel (%p228) target = $region40
      $region39: #{tpu_custom_call.1} parent=5 // pred_region
        // Predicated region
        $region41: #{tpu_custom_call.1} parent=39 // pred_check
          %p231 = pneg %p36
        $region42: #{tpu_custom_call.1} parent=39 // pred_check_branch
          %233 = sbr.rel (%p231) target = $region44
        $region43: #{tpu_custom_call.1} parent=39 // pred_region
          %p234 = scmp.lt.s32.totalorder %s16, 1
          %s235 = scalar_select %p234, %s16, 1
          %s236 = smul.addr %s235, 2
          %s237 = smul.addr %s236, 8
          %s238 = scalar_lea.vmem %s0, %s237
        $region44: #{tpu_custom_call.1} parent=39 // pred_fallthru
          _
      $region40: #{tpu_custom_call.1} parent=5 // pred_fallthru
        _
      %p239 = scmp.le.s32.totalorder 1, %s16
      %p240 = scmp.lt.s32.totalorder %s16, 3
      %p241 = pnand %p239, %p240
      %p242 = pneg %p241
      // Predicated region
      $region45: #{tpu_custom_call.1} parent=5 // pred_check
        _
      $region46: #{tpu_custom_call.1} parent=5 // pred_check_branch
        %244 = sbr.rel (%p241) target = $region48
      $region47: #{tpu_custom_call.1} parent=5 // pred_region
        %s245 = ssub.s32 %s16, 1
        %p246 = scmp.lt.s32.totalorder %s21, 1
        %s247 = scalar_select %p246, %s21, 1
        %s248 = smul.addr %s247, 2
        %s249 = smul.addr %s248, 8
        %s250 = scalar_lea.vmem %s0, %s249
        %p251 = pneg %p42
        %p252 = pneg %p39
        %p253 = pneg %p63
        %p254 = pneg %p60
        %p255 = pneg %p84
        %p256 = pneg %p81
        %p257 = pneg %p105
        %p258 = pneg %p102
        %p259 = pneg %p126
        %p260 = pneg %p123
        %p261 = pneg %p147
        %p262 = pneg %p144
        %p263 = pneg %p168
        %p264 = pneg %p165
        %p265 = pneg %p194
        %p266 = pneg %p191
        %s267 = sand.u32 %s181, 1
        %s268 = scalar_lea.sflag [#allocation3], %s267
        %s269 = sand.u32 %s181, 1
        %s270 = smul.addr %s269, 16
        %s271 = scalar_lea.vmem [#allocation2], %s270
        %p272 = scmp.lt.s32.totalorder %s21, 1
        %s273 = scalar_select %p272, %s21, 1
        %s274 = smul.addr %s273, 2
        %s275 = smul.addr %s274, 8
        %s276 = scalar_lea.vmem %s0, %s275
        %v278 = vld [vmem:[%s1] sm:$0xf]
        %v279 = vld [vmem:[%s2] sm:$0xff]
        %v280 = vld [vmem:[%s3] sm:$0xf]
        %v281 = vld [vmem:[%s3 + $0x4] sm:$0xf]
        %v282 = vld [vmem:[%s3 + $0x8] sm:$0xf]
        %v283 = vld [vmem:[%s3 + $0xc] sm:$0xf]
        %v284 = vld [vmem:[%s3 + $0x10] sm:$0xf]
        %v285 = vld [vmem:[%s3 + $0x14] sm:$0xf]
        %v286 = vld [vmem:[%s3 + $0x18] sm:$0xf]
        %v287 = vld [vmem:[%s3 + $0x1c] sm:$0xf]
        %v288 = vld [vmem:[%s3 + $0x20] sm:$0xf]
        %v289 = vld [vmem:[%s3 + $0x24] sm:$0xf]
        %v290 = vld [vmem:[%s3 + $0x28] sm:$0xf]
        %v291 = vld [vmem:[%s3 + $0x2c] sm:$0xf]
        %v292 = vld [vmem:[%s3 + $0x30] sm:$0xf]
        %v293 = vld [vmem:[%s3 + $0x34] sm:$0xf]
        %v294 = vld [vmem:[%s3 + $0x38] sm:$0xf]
        %v295 = vld [vmem:[%s3 + $0x3c] sm:$0xf]
        %v296 = vld [vmem:[%s3 + $0x40] sm:$0xf]
        %v297 = vld [vmem:[%s3 + $0x44] sm:$0xf]
        %v298 = vld [vmem:[%s3 + $0x48] sm:$0xf]
        %v299 = vld [vmem:[%s3 + $0x4c] sm:$0xf]
        %v300 = vld [vmem:[%s3 + $0x50] sm:$0xf]
        %v301 = vld [vmem:[%s3 + $0x54] sm:$0xf]
        %v302 = vld [vmem:[%s3 + $0x58] sm:$0xf]
        %v303 = vld [vmem:[%s3 + $0x5c] sm:$0xf]
        %v304 = vld [vmem:[%s3 + $0x60] sm:$0xf]
        %v305 = vld [vmem:[%s3 + $0x64] sm:$0xf]
        %v306 = vld [vmem:[%s3 + $0x68] sm:$0xf]
        %v307 = vld [vmem:[%s3 + $0x6c] sm:$0xf]
        %v308 = vld [vmem:[%s3 + $0x70] sm:$0xf]
        %v309 = vld [vmem:[%s3 + $0x74] sm:$0xf]
        %v310 = vld [vmem:[%s3 + $0x78] sm:$0xf]
        %v311 = vld [vmem:[%s3 + $0x7c] sm:$0xf]
        %v312 = vld [vmem:[%s4] sm:$0xff]
        %v313 = vld [vmem:[%s4 + $0x8] sm:$0xff]
        %v314 = vld [vmem:[%s5] sm:$0xf]
        %v315 = vld [vmem:[%s5 + $0x4] sm:$0xf]
        %v316 = vld [vmem:[%s5 + $0x8] sm:$0xf]
        %v317 = vld [vmem:[%s5 + $0xc] sm:$0xf]
        %v318 = vld [vmem:[%s5 + $0x10] sm:$0xf]
        %v319 = vld [vmem:[%s5 + $0x14] sm:$0xf]
        %v320 = vld [vmem:[%s5 + $0x18] sm:$0xf]
        %v321 = vld [vmem:[%s5 + $0x1c] sm:$0xf]
        %v322 = vld [vmem:[%s5 + $0x20] sm:$0xf]
        %v323 = vld [vmem:[%s5 + $0x24] sm:$0xf]
        %v324 = vld [vmem:[%s5 + $0x28] sm:$0xf]
        %v325 = vld [vmem:[%s5 + $0x2c] sm:$0xf]
        %v326 = vld [vmem:[%s5 + $0x30] sm:$0xf]
        %v327 = vld [vmem:[%s5 + $0x34] sm:$0xf]
        %v328 = vld [vmem:[%s5 + $0x38] sm:$0xf]
        %v329 = vld [vmem:[%s5 + $0x3c] sm:$0xf]
        %v330 = vld [vmem:[%s5 + $0x40] sm:$0xf]
        %v331 = vld [vmem:[%s5 + $0x44] sm:$0xf]
        %v332 = vld [vmem:[%s5 + $0x48] sm:$0xf]
        %v333 = vld [vmem:[%s5 + $0x4c] sm:$0xf]
        %v334 = vld [vmem:[%s5 + $0x50] sm:$0xf]
        %v335 = vld [vmem:[%s5 + $0x54] sm:$0xf]
        %v336 = vld [vmem:[%s5 + $0x58] sm:$0xf]
        %v337 = vld [vmem:[%s5 + $0x5c] sm:$0xf]
        %v338 = vld [vmem:[%s5 + $0x60] sm:$0xf]
        %v339 = vld [vmem:[%s5 + $0x64] sm:$0xf]
        %v340 = vld [vmem:[%s5 + $0x68] sm:$0xf]
        %v341 = vld [vmem:[%s5 + $0x6c] sm:$0xf]
        %v342 = vld [vmem:[%s5 + $0x70] sm:$0xf]
        %v343 = vld [vmem:[%s5 + $0x74] sm:$0xf]
        %v344 = vld [vmem:[%s5 + $0x78] sm:$0xf]
        %v345 = vld [vmem:[%s5 + $0x7c] sm:$0xf]
        %v346 = vld [vmem:[%s6] sm:$0xff]
        %v347 = vld [vmem:[%s6 + $0x8] sm:$0xff]
        %v348 = vld [vmem:[%s276] sm:$0xff]
        %v349 = vld [vmem:[%s276 + $0x8] sm:$0xff]
        %v350 = vpack.c.bf16 %v348, %v348
        %v351 = vpack.c.bf16 %v349, %v349
        %353 = vset.pattern.permute.xlu0 0
        %354 = vperm.xlu0 %353, %v279
        %v355 = vpop.permute.xlu0 %354
        %vm357 = vcmask 64512
        %v359 = vsel %vm357, %v278, 0
        %vm361 = vcmask 1043456
        %v363 = vsel %vm361, %v350, 0
        %v366 = vsel %vm361, %v351, 0
        %368 = vmatpush.bf16.msra.mxu0 0
        %369 = vmatpush.bf16.msra.mxu0 0
        %370 = vmatpush.bf16.msra.mxu0 0
        %371 = vmatpush.bf16.msra.mxu0 0
        %372 = vmatpush.bf16.msra.mxu0 0
        %373 = vmatpush.bf16.msra.mxu0 0
        %374 = vmatpush.bf16.msra.mxu0 0
        %375 = vmatpush.bf16.msra.mxu0 %v363
        %376 = vmatmul.bf16.gmra.mxu0 %v359
        %v377 = vpop.f32.mrf.mxu0
        %v378 = vadd.f32 %v355, %v377
        %v379 = vpop.f32.mrf.mxu0
        %380 = vdwg.mxu0
        %381 = vmatpush.bf16.msra.mxu0 0
        %382 = vmatpush.bf16.msra.mxu0 0
        %383 = vmatpush.bf16.msra.mxu0 0
        %384 = vmatpush.bf16.msra.mxu0 0
        %385 = vmatpush.bf16.msra.mxu0 0
        %386 = vmatpush.bf16.msra.mxu0 0
        %387 = vmatpush.bf16.msra.mxu0 0
        %388 = vmatpush.bf16.msra.mxu0 %v366
        %389 = vmatmul.bf16.gmra.mxu0 %v359
        %v390 = vpop.f32.mrf.mxu0
        %v391 = vadd.f32 %v355, %v390
        %v392 = vpop.f32.mrf.mxu0
        %393 = vdwg.mxu0
        %v394 = vpack.c.bf16 %v378, %v378
        %v395 = vpack.c.bf16 %v391, %v391
        %v428 = vunpack.c.l.b16 %v280
        %v429 = vunpack.c.l.b16 %v281
        %v430 = vunpack.c.l.b16 %v282
        %v431 = vunpack.c.l.b16 %v283
        %v432 = vunpack.c.l.b16 %v284
        %v433 = vunpack.c.l.b16 %v285
        %v434 = vunpack.c.l.b16 %v286
        %v435 = vunpack.c.l.b16 %v287
        %v436 = vunpack.c.l.b16 %v288
        %v437 = vunpack.c.l.b16 %v289
        %v438 = vunpack.c.l.b16 %v290
        %v439 = vunpack.c.l.b16 %v291
        %v440 = vunpack.c.l.b16 %v292
        %v441 = vunpack.c.l.b16 %v293
        %v442 = vunpack.c.l.b16 %v294
        %v443 = vunpack.c.l.b16 %v295
        %v444 = vunpack.c.l.b16 %v296
        %v445 = vunpack.c.l.b16 %v297
        %v446 = vunpack.c.l.b16 %v298
        %v447 = vunpack.c.l.b16 %v299
        %v448 = vunpack.c.l.b16 %v300
        %v449 = vunpack.c.l.b16 %v301
        %v450 = vunpack.c.l.b16 %v302
        %v451 = vunpack.c.l.b16 %v303
        %v452 = vunpack.c.l.b16 %v304
        %v453 = vunpack.c.l.b16 %v305
        %v454 = vunpack.c.l.b16 %v306
        %v455 = vunpack.c.l.b16 %v307
        %v456 = vunpack.c.l.b16 %v308
        %v457 = vunpack.c.l.b16 %v309
        %v458 = vunpack.c.l.b16 %v310
        %v459 = vunpack.c.l.b16 %v311
        %v460 = vpack.c.b16 %v429, %v428
        %v461 = vpack.c.b16 %v431, %v430
        %v462 = vpack.c.b16 %v433, %v432
        %v463 = vpack.c.b16 %v435, %v434
        %v464 = vpack.c.b16 %v437, %v436
        %v465 = vpack.c.b16 %v439, %v438
        %v466 = vpack.c.b16 %v441, %v440
        %v467 = vpack.c.b16 %v443, %v442
        %v468 = vpack.c.b16 %v445, %v444
        %v469 = vpack.c.b16 %v447, %v446
        %v470 = vpack.c.b16 %v449, %v448
        %v471 = vpack.c.b16 %v451, %v450
        %v472 = vpack.c.b16 %v453, %v452
        %v473 = vpack.c.b16 %v455, %v454
        %v474 = vpack.c.b16 %v457, %v456
        %v475 = vpack.c.b16 %v459, %v458
        %492 = vmatpush.bf16.msra.mxu0 %v467
        %493 = vmatpush.bf16.msra.mxu0 %v466
        %494 = vmatpush.bf16.msra.mxu0 %v465
        %495 = vmatpush.bf16.msra.mxu0 %v464
        %496 = vmatpush.bf16.msra.mxu0 %v463
        %497 = vmatpush.bf16.msra.mxu0 %v462
        %498 = vmatpush.bf16.msra.mxu0 %v461
        %499 = vmatpush.bf16.msra.mxu0 %v460
        %500 = vmatmul.bf16.gmra.mxu0 %v394
        %v501 = vpop.f32.mrf.mxu0
        %v502 = vadd.f32 0.0, %v501
        %v503 = vpop.f32.mrf.mxu0
        %504 = vdwg.mxu0
        %505 = vmatpush.bf16.msra.mxu0 %v475
        %506 = vmatpush.bf16.msra.mxu0 %v474
        %507 = vmatpush.bf16.msra.mxu0 %v473
        %508 = vmatpush.bf16.msra.mxu0 %v472
        %509 = vmatpush.bf16.msra.mxu0 %v471
        %510 = vmatpush.bf16.msra.mxu0 %v470
        %511 = vmatpush.bf16.msra.mxu0 %v469
        %512 = vmatpush.bf16.msra.mxu0 %v468
        %513 = vmatmul.bf16.gmra.mxu0 %v395
        %v514 = vpop.f32.mrf.mxu0
        %v515 = vadd.f32 %v502, %v514
        %v516 = vpop.f32.mrf.mxu0
        %517 = vdwg.mxu0
        %v518 = vmul.f32 %v515, 0.0625
        %v519 = vxor.u32 %v518, 2147483648
        %v520 = vmul.f32 %v519, 1.442695
        %v521 = vpow.pop %v520
        %v522 = vadd.f32 %v521, 1.0
        %v523 = vrcp.pop %v522
        %v524 = vmul.f32 %v522, %v523
        %v525 = vsub.f32 1.0, %v524
        %v526 = vmul.f32 %v523, %v525
        %v527 = vadd.f32 %v523, %v526
        %vm528 = vweird.f32 %v522
        %vm529 = vweird.f32 %v523
        %vm530 = vmor %vm528, %vm529
        %v531 = vsel %vm530, %v523, %v527
        %v532 = vand.u32 2147483647, %v522
        %vm533 = vcmp.eq.f32.partialorder %v532, 8.507059e+37
        %v534 = vand.u32 %v522, 2147483648
        %v535 = vor.u32 1.1754944e-38, %v534
        %v536 = vsel %vm533, %v535, %v531
        %v537 = vmul.f32 1.0, %v536
        %v570 = vunpack.c.l.b16 %v314
        %v571 = vunpack.c.l.b16 %v315
        %v572 = vunpack.c.l.b16 %v316
        %v573 = vunpack.c.l.b16 %v317
        %v574 = vunpack.c.l.b16 %v318
        %v575 = vunpack.c.l.b16 %v319
        %v576 = vunpack.c.l.b16 %v320
        %v577 = vunpack.c.l.b16 %v321
        %v578 = vunpack.c.l.b16 %v322
        %v579 = vunpack.c.l.b16 %v323
        %v580 = vunpack.c.l.b16 %v324
        %v581 = vunpack.c.l.b16 %v325
        %v582 = vunpack.c.l.b16 %v326
        %v583 = vunpack.c.l.b16 %v327
        %v584 = vunpack.c.l.b16 %v328
        %v585 = vunpack.c.l.b16 %v329
        %v586 = vunpack.c.l.b16 %v330
        %v587 = vunpack.c.l.b16 %v331
        %v588 = vunpack.c.l.b16 %v332
        %v589 = vunpack.c.l.b16 %v333
        %v590 = vunpack.c.l.b16 %v334
        %v591 = vunpack.c.l.b16 %v335
        %v592 = vunpack.c.l.b16 %v336
        %v593 = vunpack.c.l.b16 %v337
        %v594 = vunpack.c.l.b16 %v338
        %v595 = vunpack.c.l.b16 %v339
        %v596 = vunpack.c.l.b16 %v340
        %v597 = vunpack.c.l.b16 %v341
        %v598 = vunpack.c.l.b16 %v342
        %v599 = vunpack.c.l.b16 %v343
        %v600 = vunpack.c.l.b16 %v344
        %v601 = vunpack.c.l.b16 %v345
        %v602 = vpack.c.b16 %v571, %v570
        %v603 = vpack.c.b16 %v573, %v572
        %v604 = vpack.c.b16 %v575, %v574
        %v605 = vpack.c.b16 %v577, %v576
        %v606 = vpack.c.b16 %v579, %v578
        %v607 = vpack.c.b16 %v581, %v580
        %v608 = vpack.c.b16 %v583, %v582
        %v609 = vpack.c.b16 %v585, %v584
        %v610 = vpack.c.b16 %v587, %v586
        %v611 = vpack.c.b16 %v589, %v588
        %v612 = vpack.c.b16 %v591, %v590
        %v613 = vpack.c.b16 %v593, %v592
        %v614 = vpack.c.b16 %v595, %v594
        %v615 = vpack.c.b16 %v597, %v596
        %v616 = vpack.c.b16 %v599, %v598
        %v617 = vpack.c.b16 %v601, %v600
        %634 = vmatpush.bf16.msra.mxu0 %v609
        %635 = vmatpush.bf16.msra.mxu0 %v608
        %636 = vmatpush.bf16.msra.mxu0 %v607
        %637 = vmatpush.bf16.msra.mxu0 %v606
        %638 = vmatpush.bf16.msra.mxu0 %v605
        %639 = vmatpush.bf16.msra.mxu0 %v604
        %640 = vmatpush.bf16.msra.mxu0 %v603
        %641 = vmatpush.bf16.msra.mxu0 %v602
        %642 = vmatmul.bf16.gmra.mxu0 %v394
        %v643 = vpop.f32.mrf.mxu0
        %v644 = vadd.f32 0.0, %v643
        %v645 = vpop.f32.mrf.mxu0
        %646 = vdwg.mxu0
        %647 = vmatpush.bf16.msra.mxu0 %v617
        %648 = vmatpush.bf16.msra.mxu0 %v616
        %649 = vmatpush.bf16.msra.mxu0 %v615
        %650 = vmatpush.bf16.msra.mxu0 %v614
        %651 = vmatpush.bf16.msra.mxu0 %v613
        %652 = vmatpush.bf16.msra.mxu0 %v612
        %653 = vmatpush.bf16.msra.mxu0 %v611
        %654 = vmatpush.bf16.msra.mxu0 %v610
        %655 = vmatmul.bf16.gmra.mxu0 %v395
        %v656 = vpop.f32.mrf.mxu0
        %v657 = vadd.f32 %v644, %v656
        %v658 = vpop.f32.mrf.mxu0
        %659 = vdwg.mxu0
        %v660 = vmul.f32 %v657, 0.0625
        %v661 = vxor.u32 %v660, 2147483648
        %v662 = vmul.f32 %v661, 1.442695
        %v663 = vpow.pop %v662
        %v664 = vadd.f32 %v663, 1.0
        %v665 = vrcp.pop %v664
        %v666 = vmul.f32 %v664, %v665
        %v667 = vsub.f32 1.0, %v666
        %v668 = vmul.f32 %v665, %v667
        %v669 = vadd.f32 %v665, %v668
        %vm670 = vweird.f32 %v664
        %vm671 = vweird.f32 %v665
        %vm672 = vmor %vm670, %vm671
        %v673 = vsel %vm672, %v665, %v669
        %v674 = vand.u32 2147483647, %v664
        %vm675 = vcmp.eq.f32.partialorder %v674, 8.507059e+37
        %v676 = vand.u32 %v664, 2147483648
        %v677 = vor.u32 1.1754944e-38, %v676
        %v678 = vsel %vm675, %v677, %v673
        %v679 = vmul.f32 1.0, %v678
        %v680 = vpack.c.bf16 %v537, %v537
        %v683 = vunpack.c.l.b16 %v312
        %v684 = vunpack.c.h.b16 %v312
        %v685 = vunpack.c.l.b16 %v313
        %v686 = vunpack.c.h.b16 %v313
        %v687 = vpack.c.b16 %v685, %v683
        %v688 = vpack.c.b16 %v686, %v684
        %vm691 = vcmask 130048
        %v693 = vsel %vm691, %v680, 0
        %695 = vmatpush.bf16.msra.mxu0 0
        %696 = vmatpush.bf16.msra.mxu0 0
        %697 = vmatpush.bf16.msra.mxu0 0
        %698 = vmatpush.bf16.msra.mxu0 0
        %699 = vmatpush.bf16.msra.mxu0 0
        %700 = vmatpush.bf16.msra.mxu0 0
        %701 = vmatpush.bf16.msra.mxu0 0
        %702 = vmatpush.bf16.msra.mxu0 %v687
        %703 = vmatmul.bf16.gmra.mxu0 %v693
        %v704 = vpop.f32.mrf.mxu0
        %v705 = vadd.f32 0.0, %v704
        %v706 = vpop.f32.mrf.mxu0
        %707 = vdwg.mxu0
        %708 = vmatpush.bf16.msra.mxu0 0
        %709 = vmatpush.bf16.msra.mxu0 0
        %710 = vmatpush.bf16.msra.mxu0 0
        %711 = vmatpush.bf16.msra.mxu0 0
        %712 = vmatpush.bf16.msra.mxu0 0
        %713 = vmatpush.bf16.msra.mxu0 0
        %714 = vmatpush.bf16.msra.mxu0 0
        %715 = vmatpush.bf16.msra.mxu0 %v688
        %716 = vmatmul.bf16.gmra.mxu0 %v693
        %v717 = vpop.f32.mrf.mxu0
        %v718 = vadd.f32 0.0, %v717
        %v719 = vpop.f32.mrf.mxu0
        %720 = vdwg.mxu0
        %v721 = vpack.c.bf16 %v679, %v679
        %v724 = vunpack.c.l.b16 %v346
        %v725 = vunpack.c.h.b16 %v346
        %v726 = vunpack.c.l.b16 %v347
        %v727 = vunpack.c.h.b16 %v347
        %v728 = vpack.c.b16 %v726, %v724
        %v729 = vpack.c.b16 %v727, %v725
        %v733 = vsel %vm691, %v721, 0
        %735 = vmatpush.bf16.msra.mxu0 0
        %736 = vmatpush.bf16.msra.mxu0 0
        %737 = vmatpush.bf16.msra.mxu0 0
        %738 = vmatpush.bf16.msra.mxu0 0
        %739 = vmatpush.bf16.msra.mxu0 0
        %740 = vmatpush.bf16.msra.mxu0 0
        %741 = vmatpush.bf16.msra.mxu0 0
        %742 = vmatpush.bf16.msra.mxu0 %v728
        %743 = vmatmul.bf16.gmra.mxu0 %v733
        %v744 = vpop.f32.mrf.mxu0
        %v745 = vadd.f32 0.0, %v744
        %v746 = vpop.f32.mrf.mxu0
        %747 = vdwg.mxu0
        %748 = vmatpush.bf16.msra.mxu0 0
        %749 = vmatpush.bf16.msra.mxu0 0
        %750 = vmatpush.bf16.msra.mxu0 0
        %751 = vmatpush.bf16.msra.mxu0 0
        %752 = vmatpush.bf16.msra.mxu0 0
        %753 = vmatpush.bf16.msra.mxu0 0
        %754 = vmatpush.bf16.msra.mxu0 0
        %755 = vmatpush.bf16.msra.mxu0 %v729
        %756 = vmatmul.bf16.gmra.mxu0 %v733
        %v757 = vpop.f32.mrf.mxu0
        %v758 = vadd.f32 0.0, %v757
        %v759 = vpop.f32.mrf.mxu0
        %760 = vdwg.mxu0
        %v761 = vmul.f32 %v705, %v745
        %v762 = vmul.f32 %v718, %v758
        %v763 = vmul.f32 %v378, %v761
        %v764 = vmul.f32 %v391, %v762
        %v767 = vrot.slane %v761, 4
        %v768 = vrot.slane %v762, 4
        %v771 = vmul.f32 %v763, %v767
        %v772 = vmul.f32 %v764, %v768
        %v775 = vrot.slane %v771, 4
        %v776 = vrot.slane %v772, 4
        %v779 = vsel %vm361, %v763, %v775
        %v780 = vsel %vm361, %v764, %v776
        %781 = vst [vmem:[%s271] sm:$0xff] %v779
        %782 = vst [vmem:[%s271 + $0x8] sm:$0xff] %v780
        %s783 = sand.u32 %s181, 1
        %s784 = scalar_lea.sflag [#allocation3], %s783
        %s785 = sand.u32 %s181, 1
        %s786 = smul.addr %s785, 16
        %s787 = scalar_lea.vmem [#allocation2], %s786
        // Predicated region
        $region49: #{tpu_custom_call.1} parent=47 // pred_check
          %p788 = pneg %p191
        $region50: #{tpu_custom_call.1} parent=47 // pred_check_branch
          %790 = sbr.rel (%p788) target = $region52
        $region51: #{tpu_custom_call.1} parent=47 // pred_region
          %792 = vsyncadd %s784, 0
          %s793 = smul.addr %s21, 2
          %s794 = smul.addr %s793, 8
          %s795 = scalar_lea.hbm %s7, %s794
          %s797 = sshll.u32 %s787, 4
          %s798 = int_to_ptr.vmem [resolvable:$true] %s797
          %s799 = sshll.u32 %s795, 4
          %s800 = int_to_ptr.hbm [resolvable:$true] %s799
          %802 = dma.vmem_to_hbm [thread:$0]  %s798, 256, %s800, %s784
        $region52: #{tpu_custom_call.1} parent=47 // pred_fallthru
          _
      $region48: #{tpu_custom_call.1} parent=5 // pred_fallthru
        _
      %p803 = scmp.le.s32.totalorder 2, %s16
      // Predicated region
      $region53: #{tpu_custom_call.1} parent=5 // pred_check
        %p804 = pneg %p803
      $region54: #{tpu_custom_call.1} parent=5 // pred_check_branch
        %806 = sbr.rel (%p804) target = $region56
      $region55: #{tpu_custom_call.1} parent=5 // pred_region
        %s807 = ssub.s32 %s16, 2
        // Predicated region
        $region57: #{tpu_custom_call.1} parent=55 // pred_check
          %p808 = pneg %p197
        $region58: #{tpu_custom_call.1} parent=55 // pred_check_branch
          %810 = sbr.rel (%p808) target = $region60
        $region59: #{tpu_custom_call.1} parent=55 // pred_region
          %s811 = sand.u32 %s182, 1
          %s812 = scalar_lea.sflag [#allocation3], %s811
          %s813 = sand.u32 %s182, 1
          %s814 = smul.addr %s813, 16
          %s815 = scalar_lea.vmem [#allocation2], %s814
          %817 = dma.done %s812, 256
        $region60: #{tpu_custom_call.1} parent=55 // pred_fallthru
          _
      $region56: #{tpu_custom_call.1} parent=5 // pred_fallthru
        _
    $region6: #{tpu_custom_call.1} parent=1 // loop_footer
      %s20 = sadd.s32 1, %s16
    $region7: #{tpu_custom_call.1} parent=1 // loop_footer_branch
      %15 = sbr.rel target = $region3
    $region8: #{tpu_custom_call.1} parent=1 // loop_exit
      _
    %818 = vsyncpa [#allocation3], 1
    %s819 = scalar_lea.sflag [#allocation3], 1
    %820 = vsyncpa %s819, 1

</llo_original>
